<compile_context>
chip_gen: v7x
topology: tpu7x:2x2x1
jax: 0.10.0
libtpu: 0.0.40
codegen_flags: <defaults>
</compile_context>

<pallas_src>
import jax
import jax.numpy as jnp
from jax.experimental import pallas as pl
from jax.experimental.pallas import tpu as pltpu

L_LAYERS = 5
HIDDEN = 3
INPUT = 3  # must equal HIDDEN for the stacked (L*B, ...) slab layout


def net_kernel(x_ref, w_ref, lin_ref, o_ref):
    """Whole forward pass in one gridless kernel (everything fits in a few vregs).

    x_ref   : (T, B, I)          time-major input sequence
    w_ref   : (I+H+1, L*B, 4H)   slabs 0..I-1  : W_ih rows, broadcast over batch
                                 slabs I..I+H-1: W_hh rows, broadcast over batch
                                 slab  I+H     : b_ih + b_hh, broadcast over batch
                                 gate order (i, f, o, g); i/f/o columns pre-scaled
                                 by 0.5 (sigmoid folded into tanh)
    lin_ref : (H+1, H)           rows 0..H-1 = W_lin^T rows, row H = b_lin
    o_ref   : (B, H)             output
    """
    T, B, I = x_ref.shape
    n_slabs, LB, fourH = w_ref.shape
    H = fourH // 4
    L = LB // B
    assert n_slabs == I + H + 1 and I == H

    # Hoist the 7 packed weight/bias slabs (off the recurrent chain, ~14 vregs).
    wx = [w_ref[k] for k in range(I)]          # each (L*B, 4H)
    wh = [w_ref[I + k] for k in range(H)]      # each (L*B, 4H)
    b_slab = w_ref[I + H]                      # (L*B, 4H)
    row = jax.lax.broadcasted_iota(jnp.int32, (LB, 1), 0)

    h_all = jnp.zeros((LB, H), jnp.float32)    # rows [l*B:(l+1)*B] = layer l state
    c_all = jnp.zeros((LB, H), jnp.float32)

    # Anti-diagonal wavefront over the (t, l) grid: all cells with equal t + l are
    # independent and are processed as ONE vectorized slab per wave.
    for s in range(T + L - 1):
        lo = max(0, s - T + 1)                 # active layers: lo <= l < hi
        hi = min(L, s + 1)
        x_step = x_ref[min(s, T - 1)]          # (B, I); value unused when layer 0 inactive

        # Per-layer input: layer 0 sees x[t], layer l>0 sees h[l-1] (previous wave).
        xin = jnp.concatenate([x_step, h_all[: (L - 1) * B]], axis=0)   # (L*B, I)

        # Fused (L*B, 4H) pre-activation via VPU broadcast-FMAs (MXU intentionally
        # unused: a 6x12 dot is >99% padding). Two accumulators = shorter chain.
        acc_x = b_slab
        for k in range(I):
            acc_x = acc_x + xin[:, k:k + 1] * wx[k]
        acc_h = h_all[:, 0:1] * wh[0]
        for k in range(1, H):
            acc_h = acc_h + h_all[:, k:k + 1] * wh[k]

        # One EUP pass over the whole gate slab: i/f/o columns were pre-scaled by
        # 0.5, so sigmoid(z) = 0.5*tanh(z/2) + 0.5 comes out of the same tanh as g.
        t_all = jnp.tanh(acc_x + acc_h)                      # (L*B, 4H)
        ifo = 0.5 * t_all[:, : 3 * H] + 0.5
        i_g = ifo[:, 0:H]
        f_g = ifo[:, H:2 * H]
        o_g = ifo[:, 2 * H:3 * H]
        g_g = t_all[:, 3 * H:]

        c_new = f_g * c_all + i_g * g_g
        h_new = o_g * jnp.tanh(c_new)                        # 2nd (last) EUP pass of the wave

        if lo == 0 and hi == L:                              # full wave: no mask needed
            h_all, c_all = h_new, c_new
        else:                                                # partial wave: keep inactive rows
            active = (row >= lo * B) & (row < hi * B)
            h_all = jnp.where(active, h_new, h_all)
            c_all = jnp.where(active, c_new, c_all)

    # linear(3, 3) on the top layer's last hidden state (VPU FMAs, tiny).
    h_top = h_all[(L - 1) * B:, :]                           # (B, H)
    y = lin_ref[H:H + 1, :]                                  # bias row (1, H)
    for k in range(H):
        y = y + h_top[:, k:k + 1] * lin_ref[k:k + 1, :]

    # Block: max((1 + y) * x_input[:, -1, :], 0)
    o_ref[...] = jnp.maximum((1.0 + y) * x_ref[T - 1], 0.0)


def net_forward(x, w_slabs, lin):
    B, T, I = x.shape
    H = lin.shape[1]
    x_tm = jnp.transpose(x, (1, 0, 2))                       # time-major (T, B, I)
    vmem = pl.BlockSpec(memory_space=pltpu.MemorySpace.VMEM)
    # Gridless single call: all operands are tiny, no tiling / pipelining needed.
    # TODO(synk): if batch grows (esp. on v7x with 2 TCs / 64 MiB VMEM), add a
    # ("parallel",) grid over B tiles so both cores are used.
    return pl.pallas_call(
        net_kernel,
        out_shape=jax.ShapeDtypeStruct((B, H), jnp.float32),
        in_specs=[vmem, vmem, vmem],
        out_specs=vmem,
    )(x_tm, w_slabs, lin)


# ------------------------- parameter handling -------------------------
def init_raw_params(key):
    """PyTorch-convention LSTM/Linear params: uniform(-1/sqrt(H), 1/sqrt(H))."""
    s = float(HIDDEN) ** -0.5
    ks = jax.random.split(key, 6)
    w_ih = jax.random.uniform(ks[0], (L_LAYERS, 4 * HIDDEN, INPUT), jnp.float32, -s, s)
    w_hh = jax.random.uniform(ks[1], (L_LAYERS, 4 * HIDDEN, HIDDEN), jnp.float32, -s, s)
    b_ih = jax.random.uniform(ks[2], (L_LAYERS, 4 * HIDDEN), jnp.float32, -s, s)
    b_hh = jax.random.uniform(ks[3], (L_LAYERS, 4 * HIDDEN), jnp.float32, -s, s)
    w_lin = jax.random.uniform(ks[4], (HIDDEN, HIDDEN), jnp.float32, -s, s)
    b_lin = jax.random.uniform(ks[5], (HIDDEN,), jnp.float32, -s, s)
    return w_ih, w_hh, b_ih, b_hh, w_lin, b_lin


def pack_params(w_ih, w_hh, b_ih, b_hh, w_lin, b_lin, batch):
    """Pack PyTorch-layout params into the kernel's slab layout.

    * gate order (i, f, g, o) -> (i, f, o, g) so the sigmoid-like gates are the
      leading 3H lanes,
    * i/f/o columns and biases pre-scaled by 0.5 (sigmoid(z) = 0.5*tanh(z/2)+0.5),
    * weight rows replicated over the batch so each slab is a ready-to-FMA
      (L*B, 4H) operand.
    """
    L, fourH, I = w_ih.shape
    H = fourH // 4
    assert I == H, "stacked (L*B, ...) slab layout requires input_size == hidden_size"
    perm = jnp.concatenate([jnp.arange(0, 2 * H),        # i, f
                            jnp.arange(3 * H, 4 * H),     # o
                            jnp.arange(2 * H, 3 * H)])    # g
    scale = jnp.concatenate([jnp.full((3 * H,), 0.5, jnp.float32),
                             jnp.ones((H,), jnp.float32)])            # (4H,)
    w_ih_s = w_ih[:, perm, :] * scale[None, :, None]                   # (L, 4H, I)
    w_hh_s = w_hh[:, perm, :] * scale[None, :, None]                   # (L, 4H, H)
    b_s = (b_ih + b_hh)[:, perm] * scale[None, :]                      # (L, 4H)

    wx = jnp.repeat(jnp.transpose(w_ih_s, (2, 0, 1)), batch, axis=1)   # (I, L*B, 4H)
    wh = jnp.repeat(jnp.transpose(w_hh_s, (2, 0, 1)), batch, axis=1)   # (H, L*B, 4H)
    bias = jnp.repeat(b_s, batch, axis=0)[None]                        # (1, L*B, 4H)
    w_slabs = jnp.concatenate([wx, wh, bias], axis=0)                  # (I+H+1, L*B, 4H)

    lin = jnp.concatenate([jnp.transpose(w_lin), b_lin[None, :]], axis=0)  # (H+1, H)
    return w_slabs, lin


def net_reference(x, w_ih, w_hh, b_ih, b_hh, w_lin, b_lin):
    """Plain-JAX reference in PyTorch conventions (gate order i, f, g, o)."""
    B, T, I = x.shape
    L, fourH, _ = w_ih.shape
    H = fourH // 4
    h = [jnp.zeros((B, H), jnp.float32) for _ in range(L)]
    c = [jnp.zeros((B, H), jnp.float32) for _ in range(L)]
    for t in range(T):
        inp = x[:, t, :]
        for l in range(L):
            gates = inp @ w_ih[l].T + b_ih[l] + h[l] @ w_hh[l].T + b_hh[l]
            i_g = jax.nn.sigmoid(gates[:, 0:H])
            f_g = jax.nn.sigmoid(gates[:, H:2 * H])
            g_g = jnp.tanh(gates[:, 2 * H:3 * H])
            o_g = jax.nn.sigmoid(gates[:, 3 * H:4 * H])
            c[l] = f_g * c[l] + i_g * g_g
            h[l] = o_g * jnp.tanh(c[l])
            inp = h[l]
    y = h[-1] @ w_lin.T + b_lin
    return jnp.maximum((1.0 + y) * x[:, -1, :], 0.0)


if __name__ == "__main__":
    B, T = 2, 8
    key = jax.random.PRNGKey(0)
    kx, kp = jax.random.split(key)
    x = jax.random.normal(kx, (B, T, INPUT), jnp.float32)

    raw = init_raw_params(kp)
    packed = pack_params(*raw, batch=B)

    out = jax.block_until_ready(net_forward(x, *packed))
    ref = net_reference(x, *raw)

    assert out.shape == (B, HIDDEN)
    assert jnp.allclose(out, ref, atol=1e-4, rtol=1e-4), (out, ref)
    print("KERNEL_OK")
</pallas_src>

<mosaic_0001>
module attributes {stable_mosaic.version = 11 : i64} {
  func.func @net_kernel(%arg0: memref<8x2x3xf32, #tpu.memory_space<vmem>>, %arg1: memref<7x10x12xf32, #tpu.memory_space<vmem>>, %arg2: memref<4x3xf32, #tpu.memory_space<vmem>>, %arg3: memref<2x3xf32, #tpu.memory_space<vmem>>) attributes {dimension_semantics = [], scalar_prefetch = 0 : i64, scratch_operands = 0 : i64, tpu.core_type = #tpu.core_type<tc>} {
    %c0 = arith.constant 0 : index
    %c0_0 = arith.constant 0 : index
    %c0_1 = arith.constant 0 : index
    %0 = vector.load %arg1[%c0, %c0_0, %c0_1] : memref<7x10x12xf32, #tpu.memory_space<vmem>>, vector<1x10x12xf32>
    %1 = vector.shape_cast %0 : vector<1x10x12xf32> to vector<10x12xf32>
    %c1 = arith.constant 1 : index
    %c0_2 = arith.constant 0 : index
    %c0_3 = arith.constant 0 : index
    %2 = vector.load %arg1[%c1, %c0_2, %c0_3] : memref<7x10x12xf32, #tpu.memory_space<vmem>>, vector<1x10x12xf32>
    %3 = vector.shape_cast %2 : vector<1x10x12xf32> to vector<10x12xf32>
    %c2 = arith.constant 2 : index
    %c0_4 = arith.constant 0 : index
    %c0_5 = arith.constant 0 : index
    %4 = vector.load %arg1[%c2, %c0_4, %c0_5] : memref<7x10x12xf32, #tpu.memory_space<vmem>>, vector<1x10x12xf32>
    %5 = vector.shape_cast %4 : vector<1x10x12xf32> to vector<10x12xf32>
    %c3 = arith.constant 3 : index
    %c0_6 = arith.constant 0 : index
    %c0_7 = arith.constant 0 : index
    %6 = vector.load %arg1[%c3, %c0_6, %c0_7] : memref<7x10x12xf32, #tpu.memory_space<vmem>>, vector<1x10x12xf32>
    %7 = vector.shape_cast %6 : vector<1x10x12xf32> to vector<10x12xf32>
    %c4 = arith.constant 4 : index
    %c0_8 = arith.constant 0 : index
    %c0_9 = arith.constant 0 : index
    %8 = vector.load %arg1[%c4, %c0_8, %c0_9] : memref<7x10x12xf32, #tpu.memory_space<vmem>>, vector<1x10x12xf32>
    %9 = vector.shape_cast %8 : vector<1x10x12xf32> to vector<10x12xf32>
    %c5 = arith.constant 5 : index
    %c0_10 = arith.constant 0 : index
    %c0_11 = arith.constant 0 : index
    %10 = vector.load %arg1[%c5, %c0_10, %c0_11] : memref<7x10x12xf32, #tpu.memory_space<vmem>>, vector<1x10x12xf32>
    %11 = vector.shape_cast %10 : vector<1x10x12xf32> to vector<10x12xf32>
    %c6 = arith.constant 6 : index
    %c0_12 = arith.constant 0 : index
    %c0_13 = arith.constant 0 : index
    %12 = vector.load %arg1[%c6, %c0_12, %c0_13] : memref<7x10x12xf32, #tpu.memory_space<vmem>>, vector<1x10x12xf32>
    %13 = vector.shape_cast %12 : vector<1x10x12xf32> to vector<10x12xf32>
    %14 = tpu.iota {dimensions = array<i32: 0>} : vector<10x1xi32>
    %cst = arith.constant 0.000000e+00 : f32
    %15 = vector.broadcast %cst : f32 to vector<10x3xf32>
    %cst_14 = arith.constant 0.000000e+00 : f32
    %16 = vector.broadcast %cst_14 : f32 to vector<10x3xf32>
    %c0_15 = arith.constant 0 : index
    %c0_16 = arith.constant 0 : index
    %c0_17 = arith.constant 0 : index
    %17 = vector.load %arg0[%c0_15, %c0_16, %c0_17] : memref<8x2x3xf32, #tpu.memory_space<vmem>>, vector<1x2x3xf32>
    %18 = vector.shape_cast %17 : vector<1x2x3xf32> to vector<2x3xf32>
    %19 = vector.extract_strided_slice %15 {offsets = [0, 0], sizes = [8, 3], strides = [1, 1]} : vector<10x3xf32> to vector<8x3xf32>
    %20 = tpu.concatenate %18, %19 in 0 : vector<2x3xf32>, vector<8x3xf32> -> vector<10x3xf32>
    %21 = vector.extract_strided_slice %20 {offsets = [0, 0], sizes = [10, 1], strides = [1, 1]} : vector<10x3xf32> to vector<10x1xf32>
    %22 = vector.broadcast %21 : vector<10x1xf32> to vector<10x12xf32>
    %23 = arith.mulf %22, %1 : vector<10x12xf32>
    %24 = arith.addf %13, %23 : vector<10x12xf32>
    %25 = vector.extract_strided_slice %20 {offsets = [0, 1], sizes = [10, 1], strides = [1, 1]} : vector<10x3xf32> to vector<10x1xf32>
    %26 = vector.broadcast %25 : vector<10x1xf32> to vector<10x12xf32>
    %27 = arith.mulf %26, %3 : vector<10x12xf32>
    %28 = arith.addf %24, %27 : vector<10x12xf32>
    %29 = vector.extract_strided_slice %20 {offsets = [0, 2], sizes = [10, 1], strides = [1, 1]} : vector<10x3xf32> to vector<10x1xf32>
    %30 = vector.broadcast %29 : vector<10x1xf32> to vector<10x12xf32>
    %31 = arith.mulf %30, %5 : vector<10x12xf32>
    %32 = arith.addf %28, %31 : vector<10x12xf32>
    %33 = vector.extract_strided_slice %15 {offsets = [0, 0], sizes = [10, 1], strides = [1, 1]} : vector<10x3xf32> to vector<10x1xf32>
    %34 = vector.broadcast %33 : vector<10x1xf32> to vector<10x12xf32>
    %35 = arith.mulf %34, %7 : vector<10x12xf32>
    %36 = vector.extract_strided_slice %15 {offsets = [0, 1], sizes = [10, 1], strides = [1, 1]} : vector<10x3xf32> to vector<10x1xf32>
    %37 = vector.broadcast %36 : vector<10x1xf32> to vector<10x12xf32>
    %38 = arith.mulf %37, %9 : vector<10x12xf32>
    %39 = arith.addf %35, %38 : vector<10x12xf32>
    %40 = vector.extract_strided_slice %15 {offsets = [0, 2], sizes = [10, 1], strides = [1, 1]} : vector<10x3xf32> to vector<10x1xf32>
    %41 = vector.broadcast %40 : vector<10x1xf32> to vector<10x12xf32>
    %42 = arith.mulf %41, %11 : vector<10x12xf32>
    %43 = arith.addf %39, %42 : vector<10x12xf32>
    %44 = arith.addf %32, %43 : vector<10x12xf32>
    %45 = math.tanh %44 : vector<10x12xf32>
    %46 = vector.extract_strided_slice %45 {offsets = [0, 0], sizes = [10, 9], strides = [1, 1]} : vector<10x12xf32> to vector<10x9xf32>
    %cst_18 = arith.constant 5.000000e-01 : f32
    %47 = vector.broadcast %cst_18 : f32 to vector<10x9xf32>
    %48 = arith.mulf %47, %46 : vector<10x9xf32>
    %cst_19 = arith.constant 5.000000e-01 : f32
    %49 = vector.broadcast %cst_19 : f32 to vector<10x9xf32>
    %50 = arith.addf %48, %49 : vector<10x9xf32>
    %51 = vector.extract_strided_slice %50 {offsets = [0, 0], sizes = [10, 3], strides = [1, 1]} : vector<10x9xf32> to vector<10x3xf32>
    %52 = vector.extract_strided_slice %50 {offsets = [0, 3], sizes = [10, 3], strides = [1, 1]} : vector<10x9xf32> to vector<10x3xf32>
    %53 = vector.extract_strided_slice %50 {offsets = [0, 6], sizes = [10, 3], strides = [1, 1]} : vector<10x9xf32> to vector<10x3xf32>
    %54 = vector.extract_strided_slice %45 {offsets = [0, 9], sizes = [10, 3], strides = [1, 1]} : vector<10x12xf32> to vector<10x3xf32>
    %55 = arith.mulf %52, %16 : vector<10x3xf32>
    %56 = arith.mulf %51, %54 : vector<10x3xf32>
    %57 = arith.addf %55, %56 : vector<10x3xf32>
    %58 = math.tanh %57 : vector<10x3xf32>
    %59 = arith.mulf %53, %58 : vector<10x3xf32>
    %c0_i32 = arith.constant 0 : i32
    %60 = vector.broadcast %c0_i32 : i32 to vector<10x1xi32>
    %61 = arith.cmpi sge, %14, %60 : vector<10x1xi32>
    %c2_i32 = arith.constant 2 : i32
    %62 = vector.broadcast %c2_i32 : i32 to vector<10x1xi32>
    %63 = arith.cmpi slt, %14, %62 : vector<10x1xi32>
    %64 = arith.andi %61, %63 : vector<10x1xi1>
    %65 = vector.shape_cast %64 : vector<10x1xi1> to vector<10x1xi1>
    %66 = vector.broadcast %65 : vector<10x1xi1> to vector<10x3xi1>
    %67 = arith.select %66, %59, %15 : vector<10x3xi1>, vector<10x3xf32>
    %68 = vector.shape_cast %64 : vector<10x1xi1> to vector<10x1xi1>
    %69 = vector.broadcast %68 : vector<10x1xi1> to vector<10x3xi1>
    %70 = arith.select %69, %57, %16 : vector<10x3xi1>, vector<10x3xf32>
    %c1_20 = arith.constant 1 : index
    %c0_21 = arith.constant 0 : index
    %c0_22 = arith.constant 0 : index
    %71 = vector.load %arg0[%c1_20, %c0_21, %c0_22] : memref<8x2x3xf32, #tpu.memory_space<vmem>>, vector<1x2x3xf32>
    %72 = vector.shape_cast %71 : vector<1x2x3xf32> to vector<2x3xf32>
    %73 = vector.extract_strided_slice %67 {offsets = [0, 0], sizes = [8, 3], strides = [1, 1]} : vector<10x3xf32> to vector<8x3xf32>
    %74 = tpu.concatenate %72, %73 in 0 : vector<2x3xf32>, vector<8x3xf32> -> vector<10x3xf32>
    %75 = vector.extract_strided_slice %74 {offsets = [0, 0], sizes = [10, 1], strides = [1, 1]} : vector<10x3xf32> to vector<10x1xf32>
    %76 = vector.broadcast %75 : vector<10x1xf32> to vector<10x12xf32>
    %77 = arith.mulf %76, %1 : vector<10x12xf32>
    %78 = arith.addf %13, %77 : vector<10x12xf32>
    %79 = vector.extract_strided_slice %74 {offsets = [0, 1], sizes = [10, 1], strides = [1, 1]} : vector<10x3xf32> to vector<10x1xf32>
    %80 = vector.broadcast %79 : vector<10x1xf32> to vector<10x12xf32>
    %81 = arith.mulf %80, %3 : vector<10x12xf32>
    %82 = arith.addf %78, %81 : vector<10x12xf32>
    %83 = vector.extract_strided_slice %74 {offsets = [0, 2], sizes = [10, 1], strides = [1, 1]} : vector<10x3xf32> to vector<10x1xf32>
    %84 = vector.broadcast %83 : vector<10x1xf32> to vector<10x12xf32>
    %85 = arith.mulf %84, %5 : vector<10x12xf32>
    %86 = arith.addf %82, %85 : vector<10x12xf32>
    %87 = vector.extract_strided_slice %67 {offsets = [0, 0], sizes = [10, 1], strides = [1, 1]} : vector<10x3xf32> to vector<10x1xf32>
    %88 = vector.broadcast %87 : vector<10x1xf32> to vector<10x12xf32>
    %89 = arith.mulf %88, %7 : vector<10x12xf32>
    %90 = vector.extract_strided_slice %67 {offsets = [0, 1], sizes = [10, 1], strides = [1, 1]} : vector<10x3xf32> to vector<10x1xf32>
    %91 = vector.broadcast %90 : vector<10x1xf32> to vector<10x12xf32>
    %92 = arith.mulf %91, %9 : vector<10x12xf32>
    %93 = arith.addf %89, %92 : vector<10x12xf32>
    %94 = vector.extract_strided_slice %67 {offsets = [0, 2], sizes = [10, 1], strides = [1, 1]} : vector<10x3xf32> to vector<10x1xf32>
    %95 = vector.broadcast %94 : vector<10x1xf32> to vector<10x12xf32>
    %96 = arith.mulf %95, %11 : vector<10x12xf32>
    %97 = arith.addf %93, %96 : vector<10x12xf32>
    %98 = arith.addf %86, %97 : vector<10x12xf32>
    %99 = math.tanh %98 : vector<10x12xf32>
    %100 = vector.extract_strided_slice %99 {offsets = [0, 0], sizes = [10, 9], strides = [1, 1]} : vector<10x12xf32> to vector<10x9xf32>
    %cst_23 = arith.constant 5.000000e-01 : f32
    %101 = vector.broadcast %cst_23 : f32 to vector<10x9xf32>
    %102 = arith.mulf %101, %100 : vector<10x9xf32>
    %cst_24 = arith.constant 5.000000e-01 : f32
    %103 = vector.broadcast %cst_24 : f32 to vector<10x9xf32>
    %104 = arith.addf %102, %103 : vector<10x9xf32>
    %105 = vector.extract_strided_slice %104 {offsets = [0, 0], sizes = [10, 3], strides = [1, 1]} : vector<10x9xf32> to vector<10x3xf32>
    %106 = vector.extract_strided_slice %104 {offsets = [0, 3], sizes = [10, 3], strides = [1, 1]} : vector<10x9xf32> to vector<10x3xf32>
    %107 = vector.extract_strided_slice %104 {offsets = [0, 6], sizes = [10, 3], strides = [1, 1]} : vector<10x9xf32> to vector<10x3xf32>
    %108 = vector.extract_strided_slice %99 {offsets = [0, 9], sizes = [10, 3], strides = [1, 1]} : vector<10x12xf32> to vector<10x3xf32>
    %109 = arith.mulf %106, %70 : vector<10x3xf32>
    %110 = arith.mulf %105, %108 : vector<10x3xf32>
    %111 = arith.addf %109, %110 : vector<10x3xf32>
    %112 = math.tanh %111 : vector<10x3xf32>
    %113 = arith.mulf %107, %112 : vector<10x3xf32>
    %c0_i32_25 = arith.constant 0 : i32
    %114 = vector.broadcast %c0_i32_25 : i32 to vector<10x1xi32>
    %115 = arith.cmpi sge, %14, %114 : vector<10x1xi32>
    %c4_i32 = arith.constant 4 : i32
    %116 = vector.broadcast %c4_i32 : i32 to vector<10x1xi32>
    %117 = arith.cmpi slt, %14, %116 : vector<10x1xi32>
    %118 = arith.andi %115, %117 : vector<10x1xi1>
    %119 = vector.shape_cast %118 : vector<10x1xi1> to vector<10x1xi1>
    %120 = vector.broadcast %119 : vector<10x1xi1> to vector<10x3xi1>
    %121 = arith.select %120, %113, %67 : vector<10x3xi1>, vector<10x3xf32>
    %122 = vector.shape_cast %118 : vector<10x1xi1> to vector<10x1xi1>
    %123 = vector.broadcast %122 : vector<10x1xi1> to vector<10x3xi1>
    %124 = arith.select %123, %111, %70 : vector<10x3xi1>, vector<10x3xf32>
    %c2_26 = arith.constant 2 : index
    %c0_27 = arith.constant 0 : index
    %c0_28 = arith.constant 0 : index
    %125 = vector.load %arg0[%c2_26, %c0_27, %c0_28] : memref<8x2x3xf32, #tpu.memory_space<vmem>>, vector<1x2x3xf32>
    %126 = vector.shape_cast %125 : vector<1x2x3xf32> to vector<2x3xf32>
    %127 = vector.extract_strided_slice %121 {offsets = [0, 0], sizes = [8, 3], strides = [1, 1]} : vector<10x3xf32> to vector<8x3xf32>
    %128 = tpu.concatenate %126, %127 in 0 : vector<2x3xf32>, vector<8x3xf32> -> vector<10x3xf32>
    %129 = vector.extract_strided_slice %128 {offsets = [0, 0], sizes = [10, 1], strides = [1, 1]} : vector<10x3xf32> to vector<10x1xf32>
    %130 = vector.broadcast %129 : vector<10x1xf32> to vector<10x12xf32>
    %131 = arith.mulf %130, %1 : vector<10x12xf32>
    %132 = arith.addf %13, %131 : vector<10x12xf32>
    %133 = vector.extract_strided_slice %128 {offsets = [0, 1], sizes = [10, 1], strides = [1, 1]} : vector<10x3xf32> to vector<10x1xf32>
    %134 = vector.broadcast %133 : vector<10x1xf32> to vector<10x12xf32>
    %135 = arith.mulf %134, %3 : vector<10x12xf32>
    %136 = arith.addf %132, %135 : vector<10x12xf32>
    %137 = vector.extract_strided_slice %128 {offsets = [0, 2], sizes = [10, 1], strides = [1, 1]} : vector<10x3xf32> to vector<10x1xf32>
    %138 = vector.broadcast %137 : vector<10x1xf32> to vector<10x12xf32>
    %139 = arith.mulf %138, %5 : vector<10x12xf32>
    %140 = arith.addf %136, %139 : vector<10x12xf32>
    %141 = vector.extract_strided_slice %121 {offsets = [0, 0], sizes = [10, 1], strides = [1, 1]} : vector<10x3xf32> to vector<10x1xf32>
    %142 = vector.broadcast %141 : vector<10x1xf32> to vector<10x12xf32>
    %143 = arith.mulf %142, %7 : vector<10x12xf32>
    %144 = vector.extract_strided_slice %121 {offsets = [0, 1], sizes = [10, 1], strides = [1, 1]} : vector<10x3xf32> to vector<10x1xf32>
    %145 = vector.broadcast %144 : vector<10x1xf32> to vector<10x12xf32>
    %146 = arith.mulf %145, %9 : vector<10x12xf32>
    %147 = arith.addf %143, %146 : vector<10x12xf32>
    %148 = vector.extract_strided_slice %121 {offsets = [0, 2], sizes = [10, 1], strides = [1, 1]} : vector<10x3xf32> to vector<10x1xf32>
    %149 = vector.broadcast %148 : vector<10x1xf32> to vector<10x12xf32>
    %150 = arith.mulf %149, %11 : vector<10x12xf32>
    %151 = arith.addf %147, %150 : vector<10x12xf32>
    %152 = arith.addf %140, %151 : vector<10x12xf32>
    %153 = math.tanh %152 : vector<10x12xf32>
    %154 = vector.extract_strided_slice %153 {offsets = [0, 0], sizes = [10, 9], strides = [1, 1]} : vector<10x12xf32> to vector<10x9xf32>
    %cst_29 = arith.constant 5.000000e-01 : f32
    %155 = vector.broadcast %cst_29 : f32 to vector<10x9xf32>
    %156 = arith.mulf %155, %154 : vector<10x9xf32>
    %cst_30 = arith.constant 5.000000e-01 : f32
    %157 = vector.broadcast %cst_30 : f32 to vector<10x9xf32>
    %158 = arith.addf %156, %157 : vector<10x9xf32>
    %159 = vector.extract_strided_slice %158 {offsets = [0, 0], sizes = [10, 3], strides = [1, 1]} : vector<10x9xf32> to vector<10x3xf32>
    %160 = vector.extract_strided_slice %158 {offsets = [0, 3], sizes = [10, 3], strides = [1, 1]} : vector<10x9xf32> to vector<10x3xf32>
    %161 = vector.extract_strided_slice %158 {offsets = [0, 6], sizes = [10, 3], strides = [1, 1]} : vector<10x9xf32> to vector<10x3xf32>
    %162 = vector.extract_strided_slice %153 {offsets = [0, 9], sizes = [10, 3], strides = [1, 1]} : vector<10x12xf32> to vector<10x3xf32>
    %163 = arith.mulf %160, %124 : vector<10x3xf32>
    %164 = arith.mulf %159, %162 : vector<10x3xf32>
    %165 = arith.addf %163, %164 : vector<10x3xf32>
    %166 = math.tanh %165 : vector<10x3xf32>
    %167 = arith.mulf %161, %166 : vector<10x3xf32>
    %c0_i32_31 = arith.constant 0 : i32
    %168 = vector.broadcast %c0_i32_31 : i32 to vector<10x1xi32>
    %169 = arith.cmpi sge, %14, %168 : vector<10x1xi32>
    %c6_i32 = arith.constant 6 : i32
    %170 = vector.broadcast %c6_i32 : i32 to vector<10x1xi32>
    %171 = arith.cmpi slt, %14, %170 : vector<10x1xi32>
    %172 = arith.andi %169, %171 : vector<10x1xi1>
    %173 = vector.shape_cast %172 : vector<10x1xi1> to vector<10x1xi1>
    %174 = vector.broadcast %173 : vector<10x1xi1> to vector<10x3xi1>
    %175 = arith.select %174, %167, %121 : vector<10x3xi1>, vector<10x3xf32>
    %176 = vector.shape_cast %172 : vector<10x1xi1> to vector<10x1xi1>
    %177 = vector.broadcast %176 : vector<10x1xi1> to vector<10x3xi1>
    %178 = arith.select %177, %165, %124 : vector<10x3xi1>, vector<10x3xf32>
    %c3_32 = arith.constant 3 : index
    %c0_33 = arith.constant 0 : index
    %c0_34 = arith.constant 0 : index
    %179 = vector.load %arg0[%c3_32, %c0_33, %c0_34] : memref<8x2x3xf32, #tpu.memory_space<vmem>>, vector<1x2x3xf32>
    %180 = vector.shape_cast %179 : vector<1x2x3xf32> to vector<2x3xf32>
    %181 = vector.extract_strided_slice %175 {offsets = [0, 0], sizes = [8, 3], strides = [1, 1]} : vector<10x3xf32> to vector<8x3xf32>
    %182 = tpu.concatenate %180, %181 in 0 : vector<2x3xf32>, vector<8x3xf32> -> vector<10x3xf32>
    %183 = vector.extract_strided_slice %182 {offsets = [0, 0], sizes = [10, 1], strides = [1, 1]} : vector<10x3xf32> to vector<10x1xf32>
    %184 = vector.broadcast %183 : vector<10x1xf32> to vector<10x12xf32>
    %185 = arith.mulf %184, %1 : vector<10x12xf32>
    %186 = arith.addf %13, %185 : vector<10x12xf32>
    %187 = vector.extract_strided_slice %182 {offsets = [0, 1], sizes = [10, 1], strides = [1, 1]} : vector<10x3xf32> to vector<10x1xf32>
    %188 = vector.broadcast %187 : vector<10x1xf32> to vector<10x12xf32>
    %189 = arith.mulf %188, %3 : vector<10x12xf32>
    %190 = arith.addf %186, %189 : vector<10x12xf32>
    %191 = vector.extract_strided_slice %182 {offsets = [0, 2], sizes = [10, 1], strides = [1, 1]} : vector<10x3xf32> to vector<10x1xf32>
    %192 = vector.broadcast %191 : vector<10x1xf32> to vector<10x12xf32>
    %193 = arith.mulf %192, %5 : vector<10x12xf32>
    %194 = arith.addf %190, %193 : vector<10x12xf32>
    %195 = vector.extract_strided_slice %175 {offsets = [0, 0], sizes = [10, 1], strides = [1, 1]} : vector<10x3xf32> to vector<10x1xf32>
    %196 = vector.broadcast %195 : vector<10x1xf32> to vector<10x12xf32>
    %197 = arith.mulf %196, %7 : vector<10x12xf32>
    %198 = vector.extract_strided_slice %175 {offsets = [0, 1], sizes = [10, 1], strides = [1, 1]} : vector<10x3xf32> to vector<10x1xf32>
    %199 = vector.broadcast %198 : vector<10x1xf32> to vector<10x12xf32>
    %200 = arith.mulf %199, %9 : vector<10x12xf32>
    %201 = arith.addf %197, %200 : vector<10x12xf32>
    %202 = vector.extract_strided_slice %175 {offsets = [0, 2], sizes = [10, 1], strides = [1, 1]} : vector<10x3xf32> to vector<10x1xf32>
    %203 = vector.broadcast %202 : vector<10x1xf32> to vector<10x12xf32>
    %204 = arith.mulf %203, %11 : vector<10x12xf32>
    %205 = arith.addf %201, %204 : vector<10x12xf32>
    %206 = arith.addf %194, %205 : vector<10x12xf32>
    %207 = math.tanh %206 : vector<10x12xf32>
    %208 = vector.extract_strided_slice %207 {offsets = [0, 0], sizes = [10, 9], strides = [1, 1]} : vector<10x12xf32> to vector<10x9xf32>
    %cst_35 = arith.constant 5.000000e-01 : f32
    %209 = vector.broadcast %cst_35 : f32 to vector<10x9xf32>
    %210 = arith.mulf %209, %208 : vector<10x9xf32>
    %cst_36 = arith.constant 5.000000e-01 : f32
    %211 = vector.broadcast %cst_36 : f32 to vector<10x9xf32>
    %212 = arith.addf %210, %211 : vector<10x9xf32>
    %213 = vector.extract_strided_slice %212 {offsets = [0, 0], sizes = [10, 3], strides = [1, 1]} : vector<10x9xf32> to vector<10x3xf32>
    %214 = vector.extract_strided_slice %212 {offsets = [0, 3], sizes = [10, 3], strides = [1, 1]} : vector<10x9xf32> to vector<10x3xf32>
    %215 = vector.extract_strided_slice %212 {offsets = [0, 6], sizes = [10, 3], strides = [1, 1]} : vector<10x9xf32> to vector<10x3xf32>
    %216 = vector.extract_strided_slice %207 {offsets = [0, 9], sizes = [10, 3], strides = [1, 1]} : vector<10x12xf32> to vector<10x3xf32>
    %217 = arith.mulf %214, %178 : vector<10x3xf32>
    %218 = arith.mulf %213, %216 : vector<10x3xf32>
    %219 = arith.addf %217, %218 : vector<10x3xf32>
    %220 = math.tanh %219 : vector<10x3xf32>
    %221 = arith.mulf %215, %220 : vector<10x3xf32>
    %c0_i32_37 = arith.constant 0 : i32
    %222 = vector.broadcast %c0_i32_37 : i32 to vector<10x1xi32>
    %223 = arith.cmpi sge, %14, %222 : vector<10x1xi32>
    %c8_i32 = arith.constant 8 : i32
    %224 = vector.broadcast %c8_i32 : i32 to vector<10x1xi32>
    %225 = arith.cmpi slt, %14, %224 : vector<10x1xi32>
    %226 = arith.andi %223, %225 : vector<10x1xi1>
    %227 = vector.shape_cast %226 : vector<10x1xi1> to vector<10x1xi1>
    %228 = vector.broadcast %227 : vector<10x1xi1> to vector<10x3xi1>
    %229 = arith.select %228, %221, %175 : vector<10x3xi1>, vector<10x3xf32>
    %230 = vector.shape_cast %226 : vector<10x1xi1> to vector<10x1xi1>
    %231 = vector.broadcast %230 : vector<10x1xi1> to vector<10x3xi1>
    %232 = arith.select %231, %219, %178 : vector<10x3xi1>, vector<10x3xf32>
    %c4_38 = arith.constant 4 : index
    %c0_39 = arith.constant 0 : index
    %c0_40 = arith.constant 0 : index
    %233 = vector.load %arg0[%c4_38, %c0_39, %c0_40] : memref<8x2x3xf32, #tpu.memory_space<vmem>>, vector<1x2x3xf32>
    %234 = vector.shape_cast %233 : vector<1x2x3xf32> to vector<2x3xf32>
    %235 = vector.extract_strided_slice %229 {offsets = [0, 0], sizes = [8, 3], strides = [1, 1]} : vector<10x3xf32> to vector<8x3xf32>
    %236 = tpu.concatenate %234, %235 in 0 : vector<2x3xf32>, vector<8x3xf32> -> vector<10x3xf32>
    %237 = vector.extract_strided_slice %236 {offsets = [0, 0], sizes = [10, 1], strides = [1, 1]} : vector<10x3xf32> to vector<10x1xf32>
    %238 = vector.broadcast %237 : vector<10x1xf32> to vector<10x12xf32>
    %239 = arith.mulf %238, %1 : vector<10x12xf32>
    %240 = arith.addf %13, %239 : vector<10x12xf32>
    %241 = vector.extract_strided_slice %236 {offsets = [0, 1], sizes = [10, 1], strides = [1, 1]} : vector<10x3xf32> to vector<10x1xf32>
    %242 = vector.broadcast %241 : vector<10x1xf32> to vector<10x12xf32>
    %243 = arith.mulf %242, %3 : vector<10x12xf32>
    %244 = arith.addf %240, %243 : vector<10x12xf32>
    %245 = vector.extract_strided_slice %236 {offsets = [0, 2], sizes = [10, 1], strides = [1, 1]} : vector<10x3xf32> to vector<10x1xf32>
    %246 = vector.broadcast %245 : vector<10x1xf32> to vector<10x12xf32>
    %247 = arith.mulf %246, %5 : vector<10x12xf32>
    %248 = arith.addf %244, %247 : vector<10x12xf32>
    %249 = vector.extract_strided_slice %229 {offsets = [0, 0], sizes = [10, 1], strides = [1, 1]} : vector<10x3xf32> to vector<10x1xf32>
    %250 = vector.broadcast %249 : vector<10x1xf32> to vector<10x12xf32>
    %251 = arith.mulf %250, %7 : vector<10x12xf32>
    %252 = vector.extract_strided_slice %229 {offsets = [0, 1], sizes = [10, 1], strides = [1, 1]} : vector<10x3xf32> to vector<10x1xf32>
    %253 = vector.broadcast %252 : vector<10x1xf32> to vector<10x12xf32>
    %254 = arith.mulf %253, %9 : vector<10x12xf32>
    %255 = arith.addf %251, %254 : vector<10x12xf32>
    %256 = vector.extract_strided_slice %229 {offsets = [0, 2], sizes = [10, 1], strides = [1, 1]} : vector<10x3xf32> to vector<10x1xf32>
    %257 = vector.broadcast %256 : vector<10x1xf32> to vector<10x12xf32>
    %258 = arith.mulf %257, %11 : vector<10x12xf32>
    %259 = arith.addf %255, %258 : vector<10x12xf32>
    %260 = arith.addf %248, %259 : vector<10x12xf32>
    %261 = math.tanh %260 : vector<10x12xf32>
    %262 = vector.extract_strided_slice %261 {offsets = [0, 0], sizes = [10, 9], strides = [1, 1]} : vector<10x12xf32> to vector<10x9xf32>
    %cst_41 = arith.constant 5.000000e-01 : f32
    %263 = vector.broadcast %cst_41 : f32 to vector<10x9xf32>
    %264 = arith.mulf %263, %262 : vector<10x9xf32>
    %cst_42 = arith.constant 5.000000e-01 : f32
    %265 = vector.broadcast %cst_42 : f32 to vector<10x9xf32>
    %266 = arith.addf %264, %265 : vector<10x9xf32>
    %267 = vector.extract_strided_slice %266 {offsets = [0, 0], sizes = [10, 3], strides = [1, 1]} : vector<10x9xf32> to vector<10x3xf32>
    %268 = vector.extract_strided_slice %266 {offsets = [0, 3], sizes = [10, 3], strides = [1, 1]} : vector<10x9xf32> to vector<10x3xf32>
    %269 = vector.extract_strided_slice %266 {offsets = [0, 6], sizes = [10, 3], strides = [1, 1]} : vector<10x9xf32> to vector<10x3xf32>
    %270 = vector.extract_strided_slice %261 {offsets = [0, 9], sizes = [10, 3], strides = [1, 1]} : vector<10x12xf32> to vector<10x3xf32>
    %271 = arith.mulf %268, %232 : vector<10x3xf32>
    %272 = arith.mulf %267, %270 : vector<10x3xf32>
    %273 = arith.addf %271, %272 : vector<10x3xf32>
    %274 = math.tanh %273 : vector<10x3xf32>
    %275 = arith.mulf %269, %274 : vector<10x3xf32>
    %c5_43 = arith.constant 5 : index
    %c0_44 = arith.constant 0 : index
    %c0_45 = arith.constant 0 : index
    %276 = vector.load %arg0[%c5_43, %c0_44, %c0_45] : memref<8x2x3xf32, #tpu.memory_space<vmem>>, vector<1x2x3xf32>
    %277 = vector.shape_cast %276 : vector<1x2x3xf32> to vector<2x3xf32>
    %278 = vector.extract_strided_slice %275 {offsets = [0, 0], sizes = [8, 3], strides = [1, 1]} : vector<10x3xf32> to vector<8x3xf32>
    %279 = tpu.concatenate %277, %278 in 0 : vector<2x3xf32>, vector<8x3xf32> -> vector<10x3xf32>
    %280 = vector.extract_strided_slice %279 {offsets = [0, 0], sizes = [10, 1], strides = [1, 1]} : vector<10x3xf32> to vector<10x1xf32>
    %281 = vector.broadcast %280 : vector<10x1xf32> to vector<10x12xf32>
    %282 = arith.mulf %281, %1 : vector<10x12xf32>
    %283 = arith.addf %13, %282 : vector<10x12xf32>
    %284 = vector.extract_strided_slice %279 {offsets = [0, 1], sizes = [10, 1], strides = [1, 1]} : vector<10x3xf32> to vector<10x1xf32>
    %285 = vector.broadcast %284 : vector<10x1xf32> to vector<10x12xf32>
    %286 = arith.mulf %285, %3 : vector<10x12xf32>
    %287 = arith.addf %283, %286 : vector<10x12xf32>
    %288 = vector.extract_strided_slice %279 {offsets = [0, 2], sizes = [10, 1], strides = [1, 1]} : vector<10x3xf32> to vector<10x1xf32>
    %289 = vector.broadcast %288 : vector<10x1xf32> to vector<10x12xf32>
    %290 = arith.mulf %289, %5 : vector<10x12xf32>
    %291 = arith.addf %287, %290 : vector<10x12xf32>
    %292 = vector.extract_strided_slice %275 {offsets = [0, 0], sizes = [10, 1], strides = [1, 1]} : vector<10x3xf32> to vector<10x1xf32>
    %293 = vector.broadcast %292 : vector<10x1xf32> to vector<10x12xf32>
    %294 = arith.mulf %293, %7 : vector<10x12xf32>
    %295 = vector.extract_strided_slice %275 {offsets = [0, 1], sizes = [10, 1], strides = [1, 1]} : vector<10x3xf32> to vector<10x1xf32>
    %296 = vector.broadcast %295 : vector<10x1xf32> to vector<10x12xf32>
    %297 = arith.mulf %296, %9 : vector<10x12xf32>
    %298 = arith.addf %294, %297 : vector<10x12xf32>
    %299 = vector.extract_strided_slice %275 {offsets = [0, 2], sizes = [10, 1], strides = [1, 1]} : vector<10x3xf32> to vector<10x1xf32>
    %300 = vector.broadcast %299 : vector<10x1xf32> to vector<10x12xf32>
    %301 = arith.mulf %300, %11 : vector<10x12xf32>
    %302 = arith.addf %298, %301 : vector<10x12xf32>
    %303 = arith.addf %291, %302 : vector<10x12xf32>
    %304 = math.tanh %303 : vector<10x12xf32>
    %305 = vector.extract_strided_slice %304 {offsets = [0, 0], sizes = [10, 9], strides = [1, 1]} : vector<10x12xf32> to vector<10x9xf32>
    %cst_46 = arith.constant 5.000000e-01 : f32
    %306 = vector.broadcast %cst_46 : f32 to vector<10x9xf32>
    %307 = arith.mulf %306, %305 : vector<10x9xf32>
    %cst_47 = arith.constant 5.000000e-01 : f32
    %308 = vector.broadcast %cst_47 : f32 to vector<10x9xf32>
    %309 = arith.addf %307, %308 : vector<10x9xf32>
    %310 = vector.extract_strided_slice %309 {offsets = [0, 0], sizes = [10, 3], strides = [1, 1]} : vector<10x9xf32> to vector<10x3xf32>
    %311 = vector.extract_strided_slice %309 {offsets = [0, 3], sizes = [10, 3], strides = [1, 1]} : vector<10x9xf32> to vector<10x3xf32>
    %312 = vector.extract_strided_slice %309 {offsets = [0, 6], sizes = [10, 3], strides = [1, 1]} : vector<10x9xf32> to vector<10x3xf32>
    %313 = vector.extract_strided_slice %304 {offsets = [0, 9], sizes = [10, 3], strides = [1, 1]} : vector<10x12xf32> to vector<10x3xf32>
    %314 = arith.mulf %311, %273 : vector<10x3xf32>
    %315 = arith.mulf %310, %313 : vector<10x3xf32>
    %316 = arith.addf %314, %315 : vector<10x3xf32>
    %317 = math.tanh %316 : vector<10x3xf32>
    %318 = arith.mulf %312, %317 : vector<10x3xf32>
    %c6_48 = arith.constant 6 : index
    %c0_49 = arith.constant 0 : index
    %c0_50 = arith.constant 0 : index
    %319 = vector.load %arg0[%c6_48, %c0_49, %c0_50] : memref<8x2x3xf32, #tpu.memory_space<vmem>>, vector<1x2x3xf32>
    %320 = vector.shape_cast %319 : vector<1x2x3xf32> to vector<2x3xf32>
    %321 = vector.extract_strided_slice %318 {offsets = [0, 0], sizes = [8, 3], strides = [1, 1]} : vector<10x3xf32> to vector<8x3xf32>
    %322 = tpu.concatenate %320, %321 in 0 : vector<2x3xf32>, vector<8x3xf32> -> vector<10x3xf32>
    %323 = vector.extract_strided_slice %322 {offsets = [0, 0], sizes = [10, 1], strides = [1, 1]} : vector<10x3xf32> to vector<10x1xf32>
    %324 = vector.broadcast %323 : vector<10x1xf32> to vector<10x12xf32>
    %325 = arith.mulf %324, %1 : vector<10x12xf32>
    %326 = arith.addf %13, %325 : vector<10x12xf32>
    %327 = vector.extract_strided_slice %322 {offsets = [0, 1], sizes = [10, 1], strides = [1, 1]} : vector<10x3xf32> to vector<10x1xf32>
    %328 = vector.broadcast %327 : vector<10x1xf32> to vector<10x12xf32>
    %329 = arith.mulf %328, %3 : vector<10x12xf32>
    %330 = arith.addf %326, %329 : vector<10x12xf32>
    %331 = vector.extract_strided_slice %322 {offsets = [0, 2], sizes = [10, 1], strides = [1, 1]} : vector<10x3xf32> to vector<10x1xf32>
    %332 = vector.broadcast %331 : vector<10x1xf32> to vector<10x12xf32>
    %333 = arith.mulf %332, %5 : vector<10x12xf32>
    %334 = arith.addf %330, %333 : vector<10x12xf32>
    %335 = vector.extract_strided_slice %318 {offsets = [0, 0], sizes = [10, 1], strides = [1, 1]} : vector<10x3xf32> to vector<10x1xf32>
    %336 = vector.broadcast %335 : vector<10x1xf32> to vector<10x12xf32>
    %337 = arith.mulf %336, %7 : vector<10x12xf32>
    %338 = vector.extract_strided_slice %318 {offsets = [0, 1], sizes = [10, 1], strides = [1, 1]} : vector<10x3xf32> to vector<10x1xf32>
    %339 = vector.broadcast %338 : vector<10x1xf32> to vector<10x12xf32>
    %340 = arith.mulf %339, %9 : vector<10x12xf32>
    %341 = arith.addf %337, %340 : vector<10x12xf32>
    %342 = vector.extract_strided_slice %318 {offsets = [0, 2], sizes = [10, 1], strides = [1, 1]} : vector<10x3xf32> to vector<10x1xf32>
    %343 = vector.broadcast %342 : vector<10x1xf32> to vector<10x12xf32>
    %344 = arith.mulf %343, %11 : vector<10x12xf32>
    %345 = arith.addf %341, %344 : vector<10x12xf32>
    %346 = arith.addf %334, %345 : vector<10x12xf32>
    %347 = math.tanh %346 : vector<10x12xf32>
    %348 = vector.extract_strided_slice %347 {offsets = [0, 0], sizes = [10, 9], strides = [1, 1]} : vector<10x12xf32> to vector<10x9xf32>
    %cst_51 = arith.constant 5.000000e-01 : f32
    %349 = vector.broadcast %cst_51 : f32 to vector<10x9xf32>
    %350 = arith.mulf %349, %348 : vector<10x9xf32>
    %cst_52 = arith.constant 5.000000e-01 : f32
    %351 = vector.broadcast %cst_52 : f32 to vector<10x9xf32>
    %352 = arith.addf %350, %351 : vector<10x9xf32>
    %353 = vector.extract_strided_slice %352 {offsets = [0, 0], sizes = [10, 3], strides = [1, 1]} : vector<10x9xf32> to vector<10x3xf32>
    %354 = vector.extract_strided_slice %352 {offsets = [0, 3], sizes = [10, 3], strides = [1, 1]} : vector<10x9xf32> to vector<10x3xf32>
    %355 = vector.extract_strided_slice %352 {offsets = [0, 6], sizes = [10, 3], strides = [1, 1]} : vector<10x9xf32> to vector<10x3xf32>
    %356 = vector.extract_strided_slice %347 {offsets = [0, 9], sizes = [10, 3], strides = [1, 1]} : vector<10x12xf32> to vector<10x3xf32>
    %357 = arith.mulf %354, %316 : vector<10x3xf32>
    %358 = arith.mulf %353, %356 : vector<10x3xf32>
    %359 = arith.addf %357, %358 : vector<10x3xf32>
    %360 = math.tanh %359 : vector<10x3xf32>
    %361 = arith.mulf %355, %360 : vector<10x3xf32>
    %c7 = arith.constant 7 : index
    %c0_53 = arith.constant 0 : index
    %c0_54 = arith.constant 0 : index
    %362 = vector.load %arg0[%c7, %c0_53, %c0_54] : memref<8x2x3xf32, #tpu.memory_space<vmem>>, vector<1x2x3xf32>
    %363 = vector.shape_cast %362 : vector<1x2x3xf32> to vector<2x3xf32>
    %364 = vector.extract_strided_slice %361 {offsets = [0, 0], sizes = [8, 3], strides = [1, 1]} : vector<10x3xf32> to vector<8x3xf32>
    %365 = tpu.concatenate %363, %364 in 0 : vector<2x3xf32>, vector<8x3xf32> -> vector<10x3xf32>
    %366 = vector.extract_strided_slice %365 {offsets = [0, 0], sizes = [10, 1], strides = [1, 1]} : vector<10x3xf32> to vector<10x1xf32>
    %367 = vector.broadcast %366 : vector<10x1xf32> to vector<10x12xf32>
    %368 = arith.mulf %367, %1 : vector<10x12xf32>
    %369 = arith.addf %13, %368 : vector<10x12xf32>
    %370 = vector.extract_strided_slice %365 {offsets = [0, 1], sizes = [10, 1], strides = [1, 1]} : vector<10x3xf32> to vector<10x1xf32>
    %371 = vector.broadcast %370 : vector<10x1xf32> to vector<10x12xf32>
    %372 = arith.mulf %371, %3 : vector<10x12xf32>
    %373 = arith.addf %369, %372 : vector<10x12xf32>
    %374 = vector.extract_strided_slice %365 {offsets = [0, 2], sizes = [10, 1], strides = [1, 1]} : vector<10x3xf32> to vector<10x1xf32>
    %375 = vector.broadcast %374 : vector<10x1xf32> to vector<10x12xf32>
    %376 = arith.mulf %375, %5 : vector<10x12xf32>
    %377 = arith.addf %373, %376 : vector<10x12xf32>
    %378 = vector.extract_strided_slice %361 {offsets = [0, 0], sizes = [10, 1], strides = [1, 1]} : vector<10x3xf32> to vector<10x1xf32>
    %379 = vector.broadcast %378 : vector<10x1xf32> to vector<10x12xf32>
    %380 = arith.mulf %379, %7 : vector<10x12xf32>
    %381 = vector.extract_strided_slice %361 {offsets = [0, 1], sizes = [10, 1], strides = [1, 1]} : vector<10x3xf32> to vector<10x1xf32>
    %382 = vector.broadcast %381 : vector<10x1xf32> to vector<10x12xf32>
    %383 = arith.mulf %382, %9 : vector<10x12xf32>
    %384 = arith.addf %380, %383 : vector<10x12xf32>
    %385 = vector.extract_strided_slice %361 {offsets = [0, 2], sizes = [10, 1], strides = [1, 1]} : vector<10x3xf32> to vector<10x1xf32>
    %386 = vector.broadcast %385 : vector<10x1xf32> to vector<10x12xf32>
    %387 = arith.mulf %386, %11 : vector<10x12xf32>
    %388 = arith.addf %384, %387 : vector<10x12xf32>
    %389 = arith.addf %377, %388 : vector<10x12xf32>
    %390 = math.tanh %389 : vector<10x12xf32>
    %391 = vector.extract_strided_slice %390 {offsets = [0, 0], sizes = [10, 9], strides = [1, 1]} : vector<10x12xf32> to vector<10x9xf32>
    %cst_55 = arith.constant 5.000000e-01 : f32
    %392 = vector.broadcast %cst_55 : f32 to vector<10x9xf32>
    %393 = arith.mulf %392, %391 : vector<10x9xf32>
    %cst_56 = arith.constant 5.000000e-01 : f32
    %394 = vector.broadcast %cst_56 : f32 to vector<10x9xf32>
    %395 = arith.addf %393, %394 : vector<10x9xf32>
    %396 = vector.extract_strided_slice %395 {offsets = [0, 0], sizes = [10, 3], strides = [1, 1]} : vector<10x9xf32> to vector<10x3xf32>
    %397 = vector.extract_strided_slice %395 {offsets = [0, 3], sizes = [10, 3], strides = [1, 1]} : vector<10x9xf32> to vector<10x3xf32>
    %398 = vector.extract_strided_slice %395 {offsets = [0, 6], sizes = [10, 3], strides = [1, 1]} : vector<10x9xf32> to vector<10x3xf32>
    %399 = vector.extract_strided_slice %390 {offsets = [0, 9], sizes = [10, 3], strides = [1, 1]} : vector<10x12xf32> to vector<10x3xf32>
    %400 = arith.mulf %397, %359 : vector<10x3xf32>
    %401 = arith.mulf %396, %399 : vector<10x3xf32>
    %402 = arith.addf %400, %401 : vector<10x3xf32>
    %403 = math.tanh %402 : vector<10x3xf32>
    %404 = arith.mulf %398, %403 : vector<10x3xf32>
    %c7_57 = arith.constant 7 : index
    %c0_58 = arith.constant 0 : index
    %c0_59 = arith.constant 0 : index
    %405 = vector.load %arg0[%c7_57, %c0_58, %c0_59] : memref<8x2x3xf32, #tpu.memory_space<vmem>>, vector<1x2x3xf32>
    %406 = vector.shape_cast %405 : vector<1x2x3xf32> to vector<2x3xf32>
    %407 = vector.extract_strided_slice %404 {offsets = [0, 0], sizes = [8, 3], strides = [1, 1]} : vector<10x3xf32> to vector<8x3xf32>
    %408 = tpu.concatenate %406, %407 in 0 : vector<2x3xf32>, vector<8x3xf32> -> vector<10x3xf32>
    %409 = vector.extract_strided_slice %408 {offsets = [0, 0], sizes = [10, 1], strides = [1, 1]} : vector<10x3xf32> to vector<10x1xf32>
    %410 = vector.broadcast %409 : vector<10x1xf32> to vector<10x12xf32>
    %411 = arith.mulf %410, %1 : vector<10x12xf32>
    %412 = arith.addf %13, %411 : vector<10x12xf32>
    %413 = vector.extract_strided_slice %408 {offsets = [0, 1], sizes = [10, 1], strides = [1, 1]} : vector<10x3xf32> to vector<10x1xf32>
    %414 = vector.broadcast %413 : vector<10x1xf32> to vector<10x12xf32>
    %415 = arith.mulf %414, %3 : vector<10x12xf32>
    %416 = arith.addf %412, %415 : vector<10x12xf32>
    %417 = vector.extract_strided_slice %408 {offsets = [0, 2], sizes = [10, 1], strides = [1, 1]} : vector<10x3xf32> to vector<10x1xf32>
    %418 = vector.broadcast %417 : vector<10x1xf32> to vector<10x12xf32>
    %419 = arith.mulf %418, %5 : vector<10x12xf32>
    %420 = arith.addf %416, %419 : vector<10x12xf32>
    %421 = vector.extract_strided_slice %404 {offsets = [0, 0], sizes = [10, 1], strides = [1, 1]} : vector<10x3xf32> to vector<10x1xf32>
    %422 = vector.broadcast %421 : vector<10x1xf32> to vector<10x12xf32>
    %423 = arith.mulf %422, %7 : vector<10x12xf32>
    %424 = vector.extract_strided_slice %404 {offsets = [0, 1], sizes = [10, 1], strides = [1, 1]} : vector<10x3xf32> to vector<10x1xf32>
    %425 = vector.broadcast %424 : vector<10x1xf32> to vector<10x12xf32>
    %426 = arith.mulf %425, %9 : vector<10x12xf32>
    %427 = arith.addf %423, %426 : vector<10x12xf32>
    %428 = vector.extract_strided_slice %404 {offsets = [0, 2], sizes = [10, 1], strides = [1, 1]} : vector<10x3xf32> to vector<10x1xf32>
    %429 = vector.broadcast %428 : vector<10x1xf32> to vector<10x12xf32>
    %430 = arith.mulf %429, %11 : vector<10x12xf32>
    %431 = arith.addf %427, %430 : vector<10x12xf32>
    %432 = arith.addf %420, %431 : vector<10x12xf32>
    %433 = math.tanh %432 : vector<10x12xf32>
    %434 = vector.extract_strided_slice %433 {offsets = [0, 0], sizes = [10, 9], strides = [1, 1]} : vector<10x12xf32> to vector<10x9xf32>
    %cst_60 = arith.constant 5.000000e-01 : f32
    %435 = vector.broadcast %cst_60 : f32 to vector<10x9xf32>
    %436 = arith.mulf %435, %434 : vector<10x9xf32>
    %cst_61 = arith.constant 5.000000e-01 : f32
    %437 = vector.broadcast %cst_61 : f32 to vector<10x9xf32>
    %438 = arith.addf %436, %437 : vector<10x9xf32>
    %439 = vector.extract_strided_slice %438 {offsets = [0, 0], sizes = [10, 3], strides = [1, 1]} : vector<10x9xf32> to vector<10x3xf32>
    %440 = vector.extract_strided_slice %438 {offsets = [0, 3], sizes = [10, 3], strides = [1, 1]} : vector<10x9xf32> to vector<10x3xf32>
    %441 = vector.extract_strided_slice %438 {offsets = [0, 6], sizes = [10, 3], strides = [1, 1]} : vector<10x9xf32> to vector<10x3xf32>
    %442 = vector.extract_strided_slice %433 {offsets = [0, 9], sizes = [10, 3], strides = [1, 1]} : vector<10x12xf32> to vector<10x3xf32>
    %443 = arith.mulf %440, %402 : vector<10x3xf32>
    %444 = arith.mulf %439, %442 : vector<10x3xf32>
    %445 = arith.addf %443, %444 : vector<10x3xf32>
    %446 = math.tanh %445 : vector<10x3xf32>
    %447 = arith.mulf %441, %446 : vector<10x3xf32>
    %c2_i32_62 = arith.constant 2 : i32
    %448 = vector.broadcast %c2_i32_62 : i32 to vector<10x1xi32>
    %449 = arith.cmpi sge, %14, %448 : vector<10x1xi32>
    %c10_i32 = arith.constant 10 : i32
    %450 = vector.broadcast %c10_i32 : i32 to vector<10x1xi32>
    %451 = arith.cmpi slt, %14, %450 : vector<10x1xi32>
    %452 = arith.andi %449, %451 : vector<10x1xi1>
    %453 = vector.shape_cast %452 : vector<10x1xi1> to vector<10x1xi1>
    %454 = vector.broadcast %453 : vector<10x1xi1> to vector<10x3xi1>
    %455 = arith.select %454, %447, %404 : vector<10x3xi1>, vector<10x3xf32>
    %456 = vector.shape_cast %452 : vector<10x1xi1> to vector<10x1xi1>
    %457 = vector.broadcast %456 : vector<10x1xi1> to vector<10x3xi1>
    %458 = arith.select %457, %445, %402 : vector<10x3xi1>, vector<10x3xf32>
    %c7_63 = arith.constant 7 : index
    %c0_64 = arith.constant 0 : index
    %c0_65 = arith.constant 0 : index
    %459 = vector.load %arg0[%c7_63, %c0_64, %c0_65] : memref<8x2x3xf32, #tpu.memory_space<vmem>>, vector<1x2x3xf32>
    %460 = vector.shape_cast %459 : vector<1x2x3xf32> to vector<2x3xf32>
    %461 = vector.extract_strided_slice %455 {offsets = [0, 0], sizes = [8, 3], strides = [1, 1]} : vector<10x3xf32> to vector<8x3xf32>
    %462 = tpu.concatenate %460, %461 in 0 : vector<2x3xf32>, vector<8x3xf32> -> vector<10x3xf32>
    %463 = vector.extract_strided_slice %462 {offsets = [0, 0], sizes = [10, 1], strides = [1, 1]} : vector<10x3xf32> to vector<10x1xf32>
    %464 = vector.broadcast %463 : vector<10x1xf32> to vector<10x12xf32>
    %465 = arith.mulf %464, %1 : vector<10x12xf32>
    %466 = arith.addf %13, %465 : vector<10x12xf32>
    %467 = vector.extract_strided_slice %462 {offsets = [0, 1], sizes = [10, 1], strides = [1, 1]} : vector<10x3xf32> to vector<10x1xf32>
    %468 = vector.broadcast %467 : vector<10x1xf32> to vector<10x12xf32>
    %469 = arith.mulf %468, %3 : vector<10x12xf32>
    %470 = arith.addf %466, %469 : vector<10x12xf32>
    %471 = vector.extract_strided_slice %462 {offsets = [0, 2], sizes = [10, 1], strides = [1, 1]} : vector<10x3xf32> to vector<10x1xf32>
    %472 = vector.broadcast %471 : vector<10x1xf32> to vector<10x12xf32>
    %473 = arith.mulf %472, %5 : vector<10x12xf32>
    %474 = arith.addf %470, %473 : vector<10x12xf32>
    %475 = vector.extract_strided_slice %455 {offsets = [0, 0], sizes = [10, 1], strides = [1, 1]} : vector<10x3xf32> to vector<10x1xf32>
    %476 = vector.broadcast %475 : vector<10x1xf32> to vector<10x12xf32>
    %477 = arith.mulf %476, %7 : vector<10x12xf32>
    %478 = vector.extract_strided_slice %455 {offsets = [0, 1], sizes = [10, 1], strides = [1, 1]} : vector<10x3xf32> to vector<10x1xf32>
    %479 = vector.broadcast %478 : vector<10x1xf32> to vector<10x12xf32>
    %480 = arith.mulf %479, %9 : vector<10x12xf32>
    %481 = arith.addf %477, %480 : vector<10x12xf32>
    %482 = vector.extract_strided_slice %455 {offsets = [0, 2], sizes = [10, 1], strides = [1, 1]} : vector<10x3xf32> to vector<10x1xf32>
    %483 = vector.broadcast %482 : vector<10x1xf32> to vector<10x12xf32>
    %484 = arith.mulf %483, %11 : vector<10x12xf32>
    %485 = arith.addf %481, %484 : vector<10x12xf32>
    %486 = arith.addf %474, %485 : vector<10x12xf32>
    %487 = math.tanh %486 : vector<10x12xf32>
    %488 = vector.extract_strided_slice %487 {offsets = [0, 0], sizes = [10, 9], strides = [1, 1]} : vector<10x12xf32> to vector<10x9xf32>
    %cst_66 = arith.constant 5.000000e-01 : f32
    %489 = vector.broadcast %cst_66 : f32 to vector<10x9xf32>
    %490 = arith.mulf %489, %488 : vector<10x9xf32>
    %cst_67 = arith.constant 5.000000e-01 : f32
    %491 = vector.broadcast %cst_67 : f32 to vector<10x9xf32>
    %492 = arith.addf %490, %491 : vector<10x9xf32>
    %493 = vector.extract_strided_slice %492 {offsets = [0, 0], sizes = [10, 3], strides = [1, 1]} : vector<10x9xf32> to vector<10x3xf32>
    %494 = vector.extract_strided_slice %492 {offsets = [0, 3], sizes = [10, 3], strides = [1, 1]} : vector<10x9xf32> to vector<10x3xf32>
    %495 = vector.extract_strided_slice %492 {offsets = [0, 6], sizes = [10, 3], strides = [1, 1]} : vector<10x9xf32> to vector<10x3xf32>
    %496 = vector.extract_strided_slice %487 {offsets = [0, 9], sizes = [10, 3], strides = [1, 1]} : vector<10x12xf32> to vector<10x3xf32>
    %497 = arith.mulf %494, %458 : vector<10x3xf32>
    %498 = arith.mulf %493, %496 : vector<10x3xf32>
    %499 = arith.addf %497, %498 : vector<10x3xf32>
    %500 = math.tanh %499 : vector<10x3xf32>
    %501 = arith.mulf %495, %500 : vector<10x3xf32>
    %c4_i32_68 = arith.constant 4 : i32
    %502 = vector.broadcast %c4_i32_68 : i32 to vector<10x1xi32>
    %503 = arith.cmpi sge, %14, %502 : vector<10x1xi32>
    %c10_i32_69 = arith.constant 10 : i32
    %504 = vector.broadcast %c10_i32_69 : i32 to vector<10x1xi32>
    %505 = arith.cmpi slt, %14, %504 : vector<10x1xi32>
    %506 = arith.andi %503, %505 : vector<10x1xi1>
    %507 = vector.shape_cast %506 : vector<10x1xi1> to vector<10x1xi1>
    %508 = vector.broadcast %507 : vector<10x1xi1> to vector<10x3xi1>
    %509 = arith.select %508, %501, %455 : vector<10x3xi1>, vector<10x3xf32>
    %510 = vector.shape_cast %506 : vector<10x1xi1> to vector<10x1xi1>
    %511 = vector.broadcast %510 : vector<10x1xi1> to vector<10x3xi1>
    %512 = arith.select %511, %499, %458 : vector<10x3xi1>, vector<10x3xf32>
    %c7_70 = arith.constant 7 : index
    %c0_71 = arith.constant 0 : index
    %c0_72 = arith.constant 0 : index
    %513 = vector.load %arg0[%c7_70, %c0_71, %c0_72] : memref<8x2x3xf32, #tpu.memory_space<vmem>>, vector<1x2x3xf32>
    %514 = vector.shape_cast %513 : vector<1x2x3xf32> to vector<2x3xf32>
    %515 = vector.extract_strided_slice %509 {offsets = [0, 0], sizes = [8, 3], strides = [1, 1]} : vector<10x3xf32> to vector<8x3xf32>
    %516 = tpu.concatenate %514, %515 in 0 : vector<2x3xf32>, vector<8x3xf32> -> vector<10x3xf32>
    %517 = vector.extract_strided_slice %516 {offsets = [0, 0], sizes = [10, 1], strides = [1, 1]} : vector<10x3xf32> to vector<10x1xf32>
    %518 = vector.broadcast %517 : vector<10x1xf32> to vector<10x12xf32>
    %519 = arith.mulf %518, %1 : vector<10x12xf32>
    %520 = arith.addf %13, %519 : vector<10x12xf32>
    %521 = vector.extract_strided_slice %516 {offsets = [0, 1], sizes = [10, 1], strides = [1, 1]} : vector<10x3xf32> to vector<10x1xf32>
    %522 = vector.broadcast %521 : vector<10x1xf32> to vector<10x12xf32>
    %523 = arith.mulf %522, %3 : vector<10x12xf32>
    %524 = arith.addf %520, %523 : vector<10x12xf32>
    %525 = vector.extract_strided_slice %516 {offsets = [0, 2], sizes = [10, 1], strides = [1, 1]} : vector<10x3xf32> to vector<10x1xf32>
    %526 = vector.broadcast %525 : vector<10x1xf32> to vector<10x12xf32>
    %527 = arith.mulf %526, %5 : vector<10x12xf32>
    %528 = arith.addf %524, %527 : vector<10x12xf32>
    %529 = vector.extract_strided_slice %509 {offsets = [0, 0], sizes = [10, 1], strides = [1, 1]} : vector<10x3xf32> to vector<10x1xf32>
    %530 = vector.broadcast %529 : vector<10x1xf32> to vector<10x12xf32>
    %531 = arith.mulf %530, %7 : vector<10x12xf32>
    %532 = vector.extract_strided_slice %509 {offsets = [0, 1], sizes = [10, 1], strides = [1, 1]} : vector<10x3xf32> to vector<10x1xf32>
    %533 = vector.broadcast %532 : vector<10x1xf32> to vector<10x12xf32>
    %534 = arith.mulf %533, %9 : vector<10x12xf32>
    %535 = arith.addf %531, %534 : vector<10x12xf32>
    %536 = vector.extract_strided_slice %509 {offsets = [0, 2], sizes = [10, 1], strides = [1, 1]} : vector<10x3xf32> to vector<10x1xf32>
    %537 = vector.broadcast %536 : vector<10x1xf32> to vector<10x12xf32>
    %538 = arith.mulf %537, %11 : vector<10x12xf32>
    %539 = arith.addf %535, %538 : vector<10x12xf32>
    %540 = arith.addf %528, %539 : vector<10x12xf32>
    %541 = math.tanh %540 : vector<10x12xf32>
    %542 = vector.extract_strided_slice %541 {offsets = [0, 0], sizes = [10, 9], strides = [1, 1]} : vector<10x12xf32> to vector<10x9xf32>
    %cst_73 = arith.constant 5.000000e-01 : f32
    %543 = vector.broadcast %cst_73 : f32 to vector<10x9xf32>
    %544 = arith.mulf %543, %542 : vector<10x9xf32>
    %cst_74 = arith.constant 5.000000e-01 : f32
    %545 = vector.broadcast %cst_74 : f32 to vector<10x9xf32>
    %546 = arith.addf %544, %545 : vector<10x9xf32>
    %547 = vector.extract_strided_slice %546 {offsets = [0, 0], sizes = [10, 3], strides = [1, 1]} : vector<10x9xf32> to vector<10x3xf32>
    %548 = vector.extract_strided_slice %546 {offsets = [0, 3], sizes = [10, 3], strides = [1, 1]} : vector<10x9xf32> to vector<10x3xf32>
    %549 = vector.extract_strided_slice %546 {offsets = [0, 6], sizes = [10, 3], strides = [1, 1]} : vector<10x9xf32> to vector<10x3xf32>
    %550 = vector.extract_strided_slice %541 {offsets = [0, 9], sizes = [10, 3], strides = [1, 1]} : vector<10x12xf32> to vector<10x3xf32>
    %551 = arith.mulf %548, %512 : vector<10x3xf32>
    %552 = arith.mulf %547, %550 : vector<10x3xf32>
    %553 = arith.addf %551, %552 : vector<10x3xf32>
    %554 = math.tanh %553 : vector<10x3xf32>
    %555 = arith.mulf %549, %554 : vector<10x3xf32>
    %c6_i32_75 = arith.constant 6 : i32
    %556 = vector.broadcast %c6_i32_75 : i32 to vector<10x1xi32>
    %557 = arith.cmpi sge, %14, %556 : vector<10x1xi32>
    %c10_i32_76 = arith.constant 10 : i32
    %558 = vector.broadcast %c10_i32_76 : i32 to vector<10x1xi32>
    %559 = arith.cmpi slt, %14, %558 : vector<10x1xi32>
    %560 = arith.andi %557, %559 : vector<10x1xi1>
    %561 = vector.shape_cast %560 : vector<10x1xi1> to vector<10x1xi1>
    %562 = vector.broadcast %561 : vector<10x1xi1> to vector<10x3xi1>
    %563 = arith.select %562, %555, %509 : vector<10x3xi1>, vector<10x3xf32>
    %564 = vector.shape_cast %560 : vector<10x1xi1> to vector<10x1xi1>
    %565 = vector.broadcast %564 : vector<10x1xi1> to vector<10x3xi1>
    %566 = arith.select %565, %553, %512 : vector<10x3xi1>, vector<10x3xf32>
    %c7_77 = arith.constant 7 : index
    %c0_78 = arith.constant 0 : index
    %c0_79 = arith.constant 0 : index
    %567 = vector.load %arg0[%c7_77, %c0_78, %c0_79] : memref<8x2x3xf32, #tpu.memory_space<vmem>>, vector<1x2x3xf32>
    %568 = vector.shape_cast %567 : vector<1x2x3xf32> to vector<2x3xf32>
    %569 = vector.extract_strided_slice %563 {offsets = [0, 0], sizes = [8, 3], strides = [1, 1]} : vector<10x3xf32> to vector<8x3xf32>
    %570 = tpu.concatenate %568, %569 in 0 : vector<2x3xf32>, vector<8x3xf32> -> vector<10x3xf32>
    %571 = vector.extract_strided_slice %570 {offsets = [0, 0], sizes = [10, 1], strides = [1, 1]} : vector<10x3xf32> to vector<10x1xf32>
    %572 = vector.broadcast %571 : vector<10x1xf32> to vector<10x12xf32>
    %573 = arith.mulf %572, %1 : vector<10x12xf32>
    %574 = arith.addf %13, %573 : vector<10x12xf32>
    %575 = vector.extract_strided_slice %570 {offsets = [0, 1], sizes = [10, 1], strides = [1, 1]} : vector<10x3xf32> to vector<10x1xf32>
    %576 = vector.broadcast %575 : vector<10x1xf32> to vector<10x12xf32>
    %577 = arith.mulf %576, %3 : vector<10x12xf32>
    %578 = arith.addf %574, %577 : vector<10x12xf32>
    %579 = vector.extract_strided_slice %570 {offsets = [0, 2], sizes = [10, 1], strides = [1, 1]} : vector<10x3xf32> to vector<10x1xf32>
    %580 = vector.broadcast %579 : vector<10x1xf32> to vector<10x12xf32>
    %581 = arith.mulf %580, %5 : vector<10x12xf32>
    %582 = arith.addf %578, %581 : vector<10x12xf32>
    %583 = vector.extract_strided_slice %563 {offsets = [0, 0], sizes = [10, 1], strides = [1, 1]} : vector<10x3xf32> to vector<10x1xf32>
    %584 = vector.broadcast %583 : vector<10x1xf32> to vector<10x12xf32>
    %585 = arith.mulf %584, %7 : vector<10x12xf32>
    %586 = vector.extract_strided_slice %563 {offsets = [0, 1], sizes = [10, 1], strides = [1, 1]} : vector<10x3xf32> to vector<10x1xf32>
    %587 = vector.broadcast %586 : vector<10x1xf32> to vector<10x12xf32>
    %588 = arith.mulf %587, %9 : vector<10x12xf32>
    %589 = arith.addf %585, %588 : vector<10x12xf32>
    %590 = vector.extract_strided_slice %563 {offsets = [0, 2], sizes = [10, 1], strides = [1, 1]} : vector<10x3xf32> to vector<10x1xf32>
    %591 = vector.broadcast %590 : vector<10x1xf32> to vector<10x12xf32>
    %592 = arith.mulf %591, %11 : vector<10x12xf32>
    %593 = arith.addf %589, %592 : vector<10x12xf32>
    %594 = arith.addf %582, %593 : vector<10x12xf32>
    %595 = math.tanh %594 : vector<10x12xf32>
    %596 = vector.extract_strided_slice %595 {offsets = [0, 0], sizes = [10, 9], strides = [1, 1]} : vector<10x12xf32> to vector<10x9xf32>
    %cst_80 = arith.constant 5.000000e-01 : f32
    %597 = vector.broadcast %cst_80 : f32 to vector<10x9xf32>
    %598 = arith.mulf %597, %596 : vector<10x9xf32>
    %cst_81 = arith.constant 5.000000e-01 : f32
    %599 = vector.broadcast %cst_81 : f32 to vector<10x9xf32>
    %600 = arith.addf %598, %599 : vector<10x9xf32>
    %601 = vector.extract_strided_slice %600 {offsets = [0, 0], sizes = [10, 3], strides = [1, 1]} : vector<10x9xf32> to vector<10x3xf32>
    %602 = vector.extract_strided_slice %600 {offsets = [0, 3], sizes = [10, 3], strides = [1, 1]} : vector<10x9xf32> to vector<10x3xf32>
    %603 = vector.extract_strided_slice %600 {offsets = [0, 6], sizes = [10, 3], strides = [1, 1]} : vector<10x9xf32> to vector<10x3xf32>
    %604 = vector.extract_strided_slice %595 {offsets = [0, 9], sizes = [10, 3], strides = [1, 1]} : vector<10x12xf32> to vector<10x3xf32>
    %605 = arith.mulf %602, %566 : vector<10x3xf32>
    %606 = arith.mulf %601, %604 : vector<10x3xf32>
    %607 = arith.addf %605, %606 : vector<10x3xf32>
    %608 = math.tanh %607 : vector<10x3xf32>
    %609 = arith.mulf %603, %608 : vector<10x3xf32>
    %c8_i32_82 = arith.constant 8 : i32
    %610 = vector.broadcast %c8_i32_82 : i32 to vector<10x1xi32>
    %611 = arith.cmpi sge, %14, %610 : vector<10x1xi32>
    %c10_i32_83 = arith.constant 10 : i32
    %612 = vector.broadcast %c10_i32_83 : i32 to vector<10x1xi32>
    %613 = arith.cmpi slt, %14, %612 : vector<10x1xi32>
    %614 = arith.andi %611, %613 : vector<10x1xi1>
    %615 = vector.shape_cast %614 : vector<10x1xi1> to vector<10x1xi1>
    %616 = vector.broadcast %615 : vector<10x1xi1> to vector<10x3xi1>
    %617 = arith.select %616, %609, %563 : vector<10x3xi1>, vector<10x3xf32>
    %618 = vector.extract_strided_slice %617 {offsets = [8, 0], sizes = [2, 3], strides = [1, 1]} : vector<10x3xf32> to vector<2x3xf32>
    %c3_84 = arith.constant 3 : index
    %c0_85 = arith.constant 0 : index
    %619 = vector.load %arg2[%c3_84, %c0_85] : memref<4x3xf32, #tpu.memory_space<vmem>>, vector<1x3xf32>
    %620 = vector.extract_strided_slice %618 {offsets = [0, 0], sizes = [2, 1], strides = [1, 1]} : vector<2x3xf32> to vector<2x1xf32>
    %c0_86 = arith.constant 0 : index
    %c0_87 = arith.constant 0 : index
    %621 = vector.load %arg2[%c0_86, %c0_87] : memref<4x3xf32, #tpu.memory_space<vmem>>, vector<1x3xf32>
    %622 = vector.broadcast %620 : vector<2x1xf32> to vector<2x3xf32>
    %623 = vector.broadcast %621 : vector<1x3xf32> to vector<2x3xf32>
    %624 = arith.mulf %622, %623 : vector<2x3xf32>
    %625 = vector.broadcast %619 : vector<1x3xf32> to vector<2x3xf32>
    %626 = arith.addf %625, %624 : vector<2x3xf32>
    %627 = vector.extract_strided_slice %618 {offsets = [0, 1], sizes = [2, 1], strides = [1, 1]} : vector<2x3xf32> to vector<2x1xf32>
    %c1_88 = arith.constant 1 : index
    %c0_89 = arith.constant 0 : index
    %628 = vector.load %arg2[%c1_88, %c0_89] : memref<4x3xf32, #tpu.memory_space<vmem>>, vector<1x3xf32>
    %629 = vector.broadcast %627 : vector<2x1xf32> to vector<2x3xf32>
    %630 = vector.broadcast %628 : vector<1x3xf32> to vector<2x3xf32>
    %631 = arith.mulf %629, %630 : vector<2x3xf32>
    %632 = arith.addf %626, %631 : vector<2x3xf32>
    %633 = vector.extract_strided_slice %618 {offsets = [0, 2], sizes = [2, 1], strides = [1, 1]} : vector<2x3xf32> to vector<2x1xf32>
    %c2_90 = arith.constant 2 : index
    %c0_91 = arith.constant 0 : index
    %634 = vector.load %arg2[%c2_90, %c0_91] : memref<4x3xf32, #tpu.memory_space<vmem>>, vector<1x3xf32>
    %635 = vector.broadcast %633 : vector<2x1xf32> to vector<2x3xf32>
    %636 = vector.broadcast %634 : vector<1x3xf32> to vector<2x3xf32>
    %637 = arith.mulf %635, %636 : vector<2x3xf32>
    %638 = arith.addf %632, %637 : vector<2x3xf32>
    %cst_92 = arith.constant 1.000000e+00 : f32
    %639 = vector.broadcast %cst_92 : f32 to vector<2x3xf32>
    %640 = arith.addf %639, %638 : vector<2x3xf32>
    %c7_93 = arith.constant 7 : index
    %c0_94 = arith.constant 0 : index
    %c0_95 = arith.constant 0 : index
    %641 = vector.load %arg0[%c7_93, %c0_94, %c0_95] : memref<8x2x3xf32, #tpu.memory_space<vmem>>, vector<1x2x3xf32>
    %642 = vector.shape_cast %641 : vector<1x2x3xf32> to vector<2x3xf32>
    %643 = arith.mulf %640, %642 : vector<2x3xf32>
    %cst_96 = arith.constant 0.000000e+00 : f32
    %644 = vector.broadcast %cst_96 : f32 to vector<2x3xf32>
    %645 = arith.maximumf %643, %644 : vector<2x3xf32>
    %c0_97 = arith.constant 0 : index
    %c0_98 = arith.constant 0 : index
    %646 = vector.load %arg3[%c0_97, %c0_98] : memref<2x3xf32, #tpu.memory_space<vmem>>, vector<2x3xf32>
    tpu.vector_store %arg3[%c0_97, %c0_98], %645 {strides = array<i32>} : memref<2x3xf32, #tpu.memory_space<vmem>>, vector<2x3xf32>,
    return
  }
}

</mosaic_0001>

<llo_original>
// kernel: tpu_custom_call.1
$region0: #{tpu_custom_call.1}
  #allocation0 [shape = 'u32[]', space=smem, size = 0x4, offset = 0x4, fixed_abs, tag = 'smem constant byte address 0x4 - core index']
  #allocation1 [shape = 'u32[144,128]{1,0:T(1,128)}', space=vmem, size = 0x12000, scoped, tag = 'internal scratch']
  %s0 = inlined_call_operand.vmem [shape: f32[8,2,3], index: 0, kind: input, shape index: {}]
  %s1 = inlined_call_operand.vmem [shape: f32[7,10,12], index: 1, kind: input, shape index: {}]
  %s2 = inlined_call_operand.vmem [shape: f32[4,3], index: 2, kind: input, shape index: {}]
  %s3 = inlined_call_operand.hbm [shape: f32[2,3], index: 3, kind: output, shape index: {}]
  %s4 = sld [smem:[#allocation0]]
  $region22: #{tpu_custom_call.1} parent=0
    _
  %s6 = ssub.s32 1, %s4
  %s7 = scalar_select 0, %s6, %s4
  $region1: #{tpu_custom_call.1} parent=0
    #allocation2 [shape = 'u8[1024]{0}', space=vmem, size = 0x400, scoped, tag = 'output window, operand 0, single buffered']
    #allocation3 [shape = 's32[1]{0}', space=sflag, size = 0x4, scoped, tag = 'scoped memory for tpu_custom_call.1']
    %8 = vsyncpa [#allocation3], 0
    // Predicated region
    $region2: #{tpu_custom_call.1} parent=1 // pred_check
      _
    $region3: #{tpu_custom_call.1} parent=1 // pred_check_branch
      %10 = sbr.rel (0) target = $region5
    $region4: #{tpu_custom_call.1} parent=1 // pred_region
      _
    $region5: #{tpu_custom_call.1} parent=1 // pred_fallthru
      _
    // Predicated region
    $region6: #{tpu_custom_call.1} parent=1 // pred_check
      _
    $region7: #{tpu_custom_call.1} parent=1 // pred_check_branch
      %12 = sbr.rel (0) target = $region9
    $region8: #{tpu_custom_call.1} parent=1 // pred_region
      _
    $region9: #{tpu_custom_call.1} parent=1 // pred_fallthru
      _
    // Predicated region
    $region10: #{tpu_custom_call.1} parent=1 // pred_check
      _
    $region11: #{tpu_custom_call.1} parent=1 // pred_check_branch
      %14 = sbr.rel (0) target = $region13
    $region12: #{tpu_custom_call.1} parent=1 // pred_region
      _
    $region13: #{tpu_custom_call.1} parent=1 // pred_fallthru
      _
    %v15 = vld [vmem:[%s1] sm:$0xff]
    %v16 = vld [vmem:[%s1 + $0x8] sm:$0x3]
    %s17 = scalar_lea.vmem %s1, 16
    %v18 = vld [vmem:[%s17] sm:$0xff]
    %v19 = vld [vmem:[%s17 + $0x8] sm:$0x3]
    %s20 = scalar_lea.vmem %s1, 32
    %v21 = vld [vmem:[%s20] sm:$0xff]
    %v22 = vld [vmem:[%s20 + $0x8] sm:$0x3]
    %s23 = scalar_lea.vmem %s1, 48
    %v24 = vld [vmem:[%s23] sm:$0xff]
    %v25 = vld [vmem:[%s23 + $0x8] sm:$0x3]
    %s26 = scalar_lea.vmem %s1, 64
    %v27 = vld [vmem:[%s26] sm:$0xff]
    %v28 = vld [vmem:[%s26 + $0x8] sm:$0x3]
    %s29 = scalar_lea.vmem %s1, 80
    %v30 = vld [vmem:[%s29] sm:$0xff]
    %v31 = vld [vmem:[%s29 + $0x8] sm:$0x3]
    %s32 = scalar_lea.vmem %s1, 96
    %v33 = vld [vmem:[%s32] sm:$0xff]
    %v34 = vld [vmem:[%s32 + $0x8] sm:$0x3]
    %v35 = vlaneseq
    %v36 = vshrl.u32 %v35, 7
    %v37 = vadd.s32 %v36, 8
    %v38 = vld [vmem:[%s0] sm:$0x3]
    %vm39 = vcmask 1041408
    %v40 = vsel %vm39, %v38, 0.0
    %42 = vset.pattern.permute.xlu0 0
    %43 = vperm.xlu0 %42, %v40
    %v44 = vpop.permute.xlu0 %43
    %47 = vset.pattern.permute.xlu0 0
    %48 = vperm.xlu0 %47, 0.0
    %v49 = vpop.permute.xlu0 %48
    %v51 = vmul.f32 %v44, %v15
    %v52 = vmul.f32 %v49, %v16
    %v53 = vadd.f32 %v33, %v51
    %v54 = vadd.f32 %v34, %v52
    %55 = vset.pattern.permute.xlu0 1
    %56 = vperm.xlu0 %55, %v40
    %v57 = vpop.permute.xlu0 %56
    %59 = vset.pattern.permute.xlu0 1
    %60 = vperm.xlu0 %59, 0.0
    %v61 = vpop.permute.xlu0 %60
    %v63 = vmul.f32 %v57, %v18
    %v64 = vmul.f32 %v61, %v19
    %v65 = vadd.f32 %v53, %v63
    %v66 = vadd.f32 %v54, %v64
    %67 = vset.pattern.permute.xlu0 2
    %68 = vperm.xlu0 %67, %v40
    %v69 = vpop.permute.xlu0 %68
    %71 = vset.pattern.permute.xlu0 2
    %72 = vperm.xlu0 %71, 0.0
    %v73 = vpop.permute.xlu0 %72
    %v75 = vmul.f32 %v69, %v21
    %v76 = vmul.f32 %v73, %v22
    %v77 = vadd.f32 %v65, %v75
    %v78 = vadd.f32 %v66, %v76
    %v79 = vmul.f32 %v24, 0.0
    %v80 = vmul.f32 %v25, 0.0
    %v81 = vmul.f32 %v27, 0.0
    %v82 = vmul.f32 %v28, 0.0
    %v83 = vadd.f32 %v79, %v81
    %v84 = vadd.f32 %v80, %v82
    %v85 = vmul.f32 %v30, 0.0
    %v86 = vmul.f32 %v31, 0.0
    %v87 = vadd.f32 %v83, %v85
    %v88 = vadd.f32 %v84, %v86
    %v89 = vadd.f32 %v77, %v87
    %v90 = vadd.f32 %v78, %v88
    %v91 = vtanh.pop %v89
    %v92 = vtanh.pop %v90
    %v93 = vmul.f32 %v91, 0.5
    %v94 = vmul.f32 %v92, 0.5
    %v95 = vadd.f32 %v93, 0.5
    %v96 = vadd.f32 %v94, 0.5
    %v97 = vmul.f32 %v95, 0.0
    %v98 = vmul.f32 %v96, 0.0
    %101 = vrot.lane.b32.xlu0 %v91, 119
    %v102 = vpop.permute.xlu0 %101
    %103 = vrot.lane.b32.xlu0 %v92, 119
    %v104 = vpop.permute.xlu0 %103
    %v107 = vmul.f32 %v95, %v102
    %v108 = vmul.f32 %v96, %v104
    %111 = vrot.lane.b32.xlu0 %v107, 3
    %v112 = vpop.permute.xlu0 %111
    %113 = vrot.lane.b32.xlu0 %v108, 3
    %v114 = vpop.permute.xlu0 %113
    %v117 = vadd.f32 %v97, %v112
    %v118 = vadd.f32 %v98, %v114
    %v119 = vtanh.pop %v117
    %v120 = vtanh.pop %v118
    %123 = vrot.lane.b32.xlu0 %v119, 3
    %v124 = vpop.permute.xlu0 %123
    %125 = vrot.lane.b32.xlu0 %v120, 3
    %v126 = vpop.permute.xlu0 %125
    %v129 = vmul.f32 %v95, %v124
    %v130 = vmul.f32 %v96, %v126
    %vm131 = vcmp.ge.s32.totalorder %v36, 0
    %vm132 = vcmp.ge.s32.totalorder %v37, 0
    %vm133 = vcmp.lt.s32.totalorder %v36, 2
    %vm134 = vcmp.lt.s32.totalorder %v37, 2
    %vm135 = vmand %vm131, %vm133
    %vm136 = vmand %vm132, %vm134
    %v137 = vsel %vm135, 1, 0
    %v138 = vsel %vm136, 1, 0
    %vm139 = vcmp.eq.s32.totalorder %v137, 1
    %vm140 = vcmp.eq.s32.totalorder %v138, 1
    %v141 = vsel %vm139, %v129, 0.0
    %v142 = vsel %vm140, %v130, 0.0
    %v143 = vsel %vm139, %v117, 0.0
    %v144 = vsel %vm140, %v118, 0.0
    %s145 = scalar_lea.vmem %s0, 2
    %v146 = vld [vmem:[%s145] sm:$0x3]
    %v148 = vrot.slane %v141, 6
    %149 = vrot.lane.b32.xlu0 %v148, 122
    %v150 = vpop.permute.xlu0 %149
    %v152 = vsel %vm39, %v146, %v150
    %154 = vset.pattern.permute.xlu0 0
    %155 = vperm.xlu0 %154, %v152
    %v156 = vpop.permute.xlu0 %155
    %158 = vset.pattern.permute.xlu0 0
    %159 = vperm.xlu0 %158, %v150
    %v160 = vpop.permute.xlu0 %159
    %v162 = vmul.f32 %v156, %v15
    %v163 = vmul.f32 %v160, %v16
    %v164 = vadd.f32 %v33, %v162
    %v165 = vadd.f32 %v34, %v163
    %166 = vset.pattern.permute.xlu0 1
    %167 = vperm.xlu0 %166, %v152
    %v168 = vpop.permute.xlu0 %167
    %170 = vset.pattern.permute.xlu0 1
    %171 = vperm.xlu0 %170, %v150
    %v172 = vpop.permute.xlu0 %171
    %v174 = vmul.f32 %v168, %v18
    %v175 = vmul.f32 %v172, %v19
    %v176 = vadd.f32 %v164, %v174
    %v177 = vadd.f32 %v165, %v175
    %178 = vset.pattern.permute.xlu0 2
    %179 = vperm.xlu0 %178, %v152
    %v180 = vpop.permute.xlu0 %179
    %182 = vset.pattern.permute.xlu0 2
    %183 = vperm.xlu0 %182, %v150
    %v184 = vpop.permute.xlu0 %183
    %v186 = vmul.f32 %v180, %v21
    %v187 = vmul.f32 %v184, %v22
    %v188 = vadd.f32 %v176, %v186
    %v189 = vadd.f32 %v177, %v187
    %190 = vset.pattern.permute.xlu0 6
    %191 = vperm.xlu0 %190, %v141
    %v192 = vpop.permute.xlu0 %191
    %195 = vset.pattern.permute.xlu0 6
    %196 = vperm.xlu0 %195, %v142
    %v197 = vpop.permute.xlu0 %196
    %v199 = vmul.f32 %v192, %v24
    %v200 = vmul.f32 %v197, %v25
    %201 = vset.pattern.permute.xlu0 7
    %202 = vperm.xlu0 %201, %v141
    %v203 = vpop.permute.xlu0 %202
    %205 = vset.pattern.permute.xlu0 7
    %206 = vperm.xlu0 %205, %v142
    %v207 = vpop.permute.xlu0 %206
    %v209 = vmul.f32 %v203, %v27
    %v210 = vmul.f32 %v207, %v28
    %v211 = vadd.f32 %v199, %v209
    %v212 = vadd.f32 %v200, %v210
    %213 = vset.pattern.permute.xlu0 8
    %214 = vperm.xlu0 %213, %v141
    %v215 = vpop.permute.xlu0 %214
    %217 = vset.pattern.permute.xlu0 8
    %218 = vperm.xlu0 %217, %v142
    %v219 = vpop.permute.xlu0 %218
    %v221 = vmul.f32 %v215, %v30
    %v222 = vmul.f32 %v219, %v31
    %v223 = vadd.f32 %v211, %v221
    %v224 = vadd.f32 %v212, %v222
    %v225 = vadd.f32 %v188, %v223
    %v226 = vadd.f32 %v189, %v224
    %v227 = vtanh.pop %v225
    %v228 = vtanh.pop %v226
    %v229 = vmul.f32 %v227, 0.5
    %v230 = vmul.f32 %v228, 0.5
    %v231 = vadd.f32 %v229, 0.5
    %v232 = vadd.f32 %v230, 0.5
    %v233 = vmul.f32 %v231, %v143
    %v234 = vmul.f32 %v232, %v144
    %237 = vrot.lane.b32.xlu0 %v227, 119
    %v238 = vpop.permute.xlu0 %237
    %239 = vrot.lane.b32.xlu0 %v228, 119
    %v240 = vpop.permute.xlu0 %239
    %v243 = vmul.f32 %v231, %v238
    %v244 = vmul.f32 %v232, %v240
    %247 = vrot.lane.b32.xlu0 %v243, 3
    %v248 = vpop.permute.xlu0 %247
    %249 = vrot.lane.b32.xlu0 %v244, 3
    %v250 = vpop.permute.xlu0 %249
    %v253 = vadd.f32 %v233, %v248
    %v254 = vadd.f32 %v234, %v250
    %v255 = vtanh.pop %v253
    %v256 = vtanh.pop %v254
    %259 = vrot.lane.b32.xlu0 %v255, 3
    %v260 = vpop.permute.xlu0 %259
    %261 = vrot.lane.b32.xlu0 %v256, 3
    %v262 = vpop.permute.xlu0 %261
    %v265 = vmul.f32 %v231, %v260
    %v266 = vmul.f32 %v232, %v262
    %vm267 = vcmp.lt.s32.totalorder %v36, 4
    %vm268 = vcmp.lt.s32.totalorder %v37, 4
    %vm269 = vmand %vm131, %vm267
    %vm270 = vmand %vm132, %vm268
    %v271 = vsel %vm269, 1, 0
    %v272 = vsel %vm270, 1, 0
    %vm273 = vcmp.eq.s32.totalorder %v271, 1
    %vm274 = vcmp.eq.s32.totalorder %v272, 1
    %v275 = vsel %vm273, %v265, %v141
    %v276 = vsel %vm274, %v266, %v142
    %v277 = vsel %vm273, %v253, %v143
    %v278 = vsel %vm274, %v254, %v144
    %s279 = scalar_lea.vmem %s0, 4
    %v280 = vld [vmem:[%s279] sm:$0x3]
    %v282 = vrot.slane %v275, 6
    %283 = vrot.lane.b32.xlu0 %v282, 122
    %v284 = vpop.permute.xlu0 %283
    %v286 = vsel %vm39, %v280, %v284
    %288 = vset.pattern.permute.xlu0 0
    %289 = vperm.xlu0 %288, %v286
    %v290 = vpop.permute.xlu0 %289
    %292 = vset.pattern.permute.xlu0 0
    %293 = vperm.xlu0 %292, %v284
    %v294 = vpop.permute.xlu0 %293
    %v296 = vmul.f32 %v290, %v15
    %v297 = vmul.f32 %v294, %v16
    %v298 = vadd.f32 %v33, %v296
    %v299 = vadd.f32 %v34, %v297
    %300 = vset.pattern.permute.xlu0 1
    %301 = vperm.xlu0 %300, %v286
    %v302 = vpop.permute.xlu0 %301
    %304 = vset.pattern.permute.xlu0 1
    %305 = vperm.xlu0 %304, %v284
    %v306 = vpop.permute.xlu0 %305
    %v308 = vmul.f32 %v302, %v18
    %v309 = vmul.f32 %v306, %v19
    %v310 = vadd.f32 %v298, %v308
    %v311 = vadd.f32 %v299, %v309
    %312 = vset.pattern.permute.xlu0 2
    %313 = vperm.xlu0 %312, %v286
    %v314 = vpop.permute.xlu0 %313
    %316 = vset.pattern.permute.xlu0 2
    %317 = vperm.xlu0 %316, %v284
    %v318 = vpop.permute.xlu0 %317
    %v320 = vmul.f32 %v314, %v21
    %v321 = vmul.f32 %v318, %v22
    %v322 = vadd.f32 %v310, %v320
    %v323 = vadd.f32 %v311, %v321
    %324 = vset.pattern.permute.xlu0 6
    %325 = vperm.xlu0 %324, %v275
    %v326 = vpop.permute.xlu0 %325
    %329 = vset.pattern.permute.xlu0 6
    %330 = vperm.xlu0 %329, %v276
    %v331 = vpop.permute.xlu0 %330
    %v333 = vmul.f32 %v326, %v24
    %v334 = vmul.f32 %v331, %v25
    %335 = vset.pattern.permute.xlu0 7
    %336 = vperm.xlu0 %335, %v275
    %v337 = vpop.permute.xlu0 %336
    %339 = vset.pattern.permute.xlu0 7
    %340 = vperm.xlu0 %339, %v276
    %v341 = vpop.permute.xlu0 %340
    %v343 = vmul.f32 %v337, %v27
    %v344 = vmul.f32 %v341, %v28
    %v345 = vadd.f32 %v333, %v343
    %v346 = vadd.f32 %v334, %v344
    %347 = vset.pattern.permute.xlu0 8
    %348 = vperm.xlu0 %347, %v275
    %v349 = vpop.permute.xlu0 %348
    %351 = vset.pattern.permute.xlu0 8
    %352 = vperm.xlu0 %351, %v276
    %v353 = vpop.permute.xlu0 %352
    %v355 = vmul.f32 %v349, %v30
    %v356 = vmul.f32 %v353, %v31
    %v357 = vadd.f32 %v345, %v355
    %v358 = vadd.f32 %v346, %v356
    %v359 = vadd.f32 %v322, %v357
    %v360 = vadd.f32 %v323, %v358
    %v361 = vtanh.pop %v359
    %v362 = vtanh.pop %v360
    %v363 = vmul.f32 %v361, 0.5
    %v364 = vmul.f32 %v362, 0.5
    %v365 = vadd.f32 %v363, 0.5
    %v366 = vadd.f32 %v364, 0.5
    %v367 = vmul.f32 %v365, %v277
    %v368 = vmul.f32 %v366, %v278
    %371 = vrot.lane.b32.xlu0 %v361, 119
    %v372 = vpop.permute.xlu0 %371
    %373 = vrot.lane.b32.xlu0 %v362, 119
    %v374 = vpop.permute.xlu0 %373
    %v377 = vmul.f32 %v365, %v372
    %v378 = vmul.f32 %v366, %v374
    %381 = vrot.lane.b32.xlu0 %v377, 3
    %v382 = vpop.permute.xlu0 %381
    %383 = vrot.lane.b32.xlu0 %v378, 3
    %v384 = vpop.permute.xlu0 %383
    %v387 = vadd.f32 %v367, %v382
    %v388 = vadd.f32 %v368, %v384
    %v389 = vtanh.pop %v387
    %v390 = vtanh.pop %v388
    %393 = vrot.lane.b32.xlu0 %v389, 3
    %v394 = vpop.permute.xlu0 %393
    %395 = vrot.lane.b32.xlu0 %v390, 3
    %v396 = vpop.permute.xlu0 %395
    %v399 = vmul.f32 %v365, %v394
    %v400 = vmul.f32 %v366, %v396
    %vm401 = vcmp.lt.s32.totalorder %v36, 6
    %vm402 = vcmp.lt.s32.totalorder %v37, 6
    %vm403 = vmand %vm131, %vm401
    %vm404 = vmand %vm132, %vm402
    %v405 = vsel %vm403, 1, 0
    %v406 = vsel %vm404, 1, 0
    %vm407 = vcmp.eq.s32.totalorder %v405, 1
    %vm408 = vcmp.eq.s32.totalorder %v406, 1
    %v409 = vsel %vm407, %v399, %v275
    %v410 = vsel %vm408, %v400, %v276
    %v411 = vsel %vm407, %v387, %v277
    %v412 = vsel %vm408, %v388, %v278
    %s413 = scalar_lea.vmem %s0, 6
    %v414 = vld [vmem:[%s413] sm:$0x3]
    %v416 = vrot.slane %v409, 6
    %417 = vrot.lane.b32.xlu0 %v416, 122
    %v418 = vpop.permute.xlu0 %417
    %v420 = vsel %vm39, %v414, %v418
    %422 = vset.pattern.permute.xlu0 0
    %423 = vperm.xlu0 %422, %v420
    %v424 = vpop.permute.xlu0 %423
    %426 = vset.pattern.permute.xlu0 0
    %427 = vperm.xlu0 %426, %v418
    %v428 = vpop.permute.xlu0 %427
    %v430 = vmul.f32 %v424, %v15
    %v431 = vmul.f32 %v428, %v16
    %v432 = vadd.f32 %v33, %v430
    %v433 = vadd.f32 %v34, %v431
    %434 = vset.pattern.permute.xlu0 1
    %435 = vperm.xlu0 %434, %v420
    %v436 = vpop.permute.xlu0 %435
    %438 = vset.pattern.permute.xlu0 1
    %439 = vperm.xlu0 %438, %v418
    %v440 = vpop.permute.xlu0 %439
    %v442 = vmul.f32 %v436, %v18
    %v443 = vmul.f32 %v440, %v19
    %v444 = vadd.f32 %v432, %v442
    %v445 = vadd.f32 %v433, %v443
    %446 = vset.pattern.permute.xlu0 2
    %447 = vperm.xlu0 %446, %v420
    %v448 = vpop.permute.xlu0 %447
    %450 = vset.pattern.permute.xlu0 2
    %451 = vperm.xlu0 %450, %v418
    %v452 = vpop.permute.xlu0 %451
    %v454 = vmul.f32 %v448, %v21
    %v455 = vmul.f32 %v452, %v22
    %v456 = vadd.f32 %v444, %v454
    %v457 = vadd.f32 %v445, %v455
    %458 = vset.pattern.permute.xlu0 6
    %459 = vperm.xlu0 %458, %v409
    %v460 = vpop.permute.xlu0 %459
    %463 = vset.pattern.permute.xlu0 6
    %464 = vperm.xlu0 %463, %v410
    %v465 = vpop.permute.xlu0 %464
    %v467 = vmul.f32 %v460, %v24
    %v468 = vmul.f32 %v465, %v25
    %469 = vset.pattern.permute.xlu0 7
    %470 = vperm.xlu0 %469, %v409
    %v471 = vpop.permute.xlu0 %470
    %473 = vset.pattern.permute.xlu0 7
    %474 = vperm.xlu0 %473, %v410
    %v475 = vpop.permute.xlu0 %474
    %v477 = vmul.f32 %v471, %v27
    %v478 = vmul.f32 %v475, %v28
    %v479 = vadd.f32 %v467, %v477
    %v480 = vadd.f32 %v468, %v478
    %481 = vset.pattern.permute.xlu0 8
    %482 = vperm.xlu0 %481, %v409
    %v483 = vpop.permute.xlu0 %482
    %485 = vset.pattern.permute.xlu0 8
    %486 = vperm.xlu0 %485, %v410
    %v487 = vpop.permute.xlu0 %486
    %v489 = vmul.f32 %v483, %v30
    %v490 = vmul.f32 %v487, %v31
    %v491 = vadd.f32 %v479, %v489
    %v492 = vadd.f32 %v480, %v490
    %v493 = vadd.f32 %v456, %v491
    %v494 = vadd.f32 %v457, %v492
    %v495 = vtanh.pop %v493
    %v496 = vtanh.pop %v494
    %v497 = vmul.f32 %v495, 0.5
    %v498 = vmul.f32 %v496, 0.5
    %v499 = vadd.f32 %v497, 0.5
    %v500 = vadd.f32 %v498, 0.5
    %v501 = vmul.f32 %v499, %v411
    %v502 = vmul.f32 %v500, %v412
    %505 = vrot.lane.b32.xlu0 %v495, 119
    %v506 = vpop.permute.xlu0 %505
    %507 = vrot.lane.b32.xlu0 %v496, 119
    %v508 = vpop.permute.xlu0 %507
    %v511 = vmul.f32 %v499, %v506
    %v512 = vmul.f32 %v500, %v508
    %515 = vrot.lane.b32.xlu0 %v511, 3
    %v516 = vpop.permute.xlu0 %515
    %517 = vrot.lane.b32.xlu0 %v512, 3
    %v518 = vpop.permute.xlu0 %517
    %v521 = vadd.f32 %v501, %v516
    %v522 = vadd.f32 %v502, %v518
    %v523 = vtanh.pop %v521
    %v524 = vtanh.pop %v522
    %527 = vrot.lane.b32.xlu0 %v523, 3
    %v528 = vpop.permute.xlu0 %527
    %529 = vrot.lane.b32.xlu0 %v524, 3
    %v530 = vpop.permute.xlu0 %529
    %v533 = vmul.f32 %v499, %v528
    %v534 = vmul.f32 %v500, %v530
    %vm535 = vcmp.lt.s32.totalorder %v36, 8
    %vm536 = vcmp.lt.s32.totalorder %v37, 8
    %vm537 = vmand %vm131, %vm535
    %vm538 = vmand %vm132, %vm536
    %v539 = vsel %vm537, 1, 0
    %v540 = vsel %vm538, 1, 0
    %vm541 = vcmp.eq.s32.totalorder %v539, 1
    %vm542 = vcmp.eq.s32.totalorder %v540, 1
    %v543 = vsel %vm541, %v533, %v409
    %v544 = vsel %vm542, %v534, %v410
    %v545 = vsel %vm541, %v521, %v411
    %v546 = vsel %vm542, %v522, %v412
    %s547 = scalar_lea.vmem %s0, 8
    %v548 = vld [vmem:[%s547] sm:$0x3]
    %v550 = vrot.slane %v543, 6
    %551 = vrot.lane.b32.xlu0 %v550, 122
    %v552 = vpop.permute.xlu0 %551
    %v554 = vsel %vm39, %v548, %v552
    %556 = vset.pattern.permute.xlu0 0
    %557 = vperm.xlu0 %556, %v554
    %v558 = vpop.permute.xlu0 %557
    %560 = vset.pattern.permute.xlu0 0
    %561 = vperm.xlu0 %560, %v552
    %v562 = vpop.permute.xlu0 %561
    %v564 = vmul.f32 %v558, %v15
    %v565 = vmul.f32 %v562, %v16
    %v566 = vadd.f32 %v33, %v564
    %v567 = vadd.f32 %v34, %v565
    %568 = vset.pattern.permute.xlu0 1
    %569 = vperm.xlu0 %568, %v554
    %v570 = vpop.permute.xlu0 %569
    %572 = vset.pattern.permute.xlu0 1
    %573 = vperm.xlu0 %572, %v552
    %v574 = vpop.permute.xlu0 %573
    %v576 = vmul.f32 %v570, %v18
    %v577 = vmul.f32 %v574, %v19
    %v578 = vadd.f32 %v566, %v576
    %v579 = vadd.f32 %v567, %v577
    %580 = vset.pattern.permute.xlu0 2
    %581 = vperm.xlu0 %580, %v554
    %v582 = vpop.permute.xlu0 %581
    %584 = vset.pattern.permute.xlu0 2
    %585 = vperm.xlu0 %584, %v552
    %v586 = vpop.permute.xlu0 %585
    %v588 = vmul.f32 %v582, %v21
    %v589 = vmul.f32 %v586, %v22
    %v590 = vadd.f32 %v578, %v588
    %v591 = vadd.f32 %v579, %v589
    %592 = vset.pattern.permute.xlu0 6
    %593 = vperm.xlu0 %592, %v543
    %v594 = vpop.permute.xlu0 %593
    %597 = vset.pattern.permute.xlu0 6
    %598 = vperm.xlu0 %597, %v544
    %v599 = vpop.permute.xlu0 %598
    %v601 = vmul.f32 %v594, %v24
    %v602 = vmul.f32 %v599, %v25
    %603 = vset.pattern.permute.xlu0 7
    %604 = vperm.xlu0 %603, %v543
    %v605 = vpop.permute.xlu0 %604
    %607 = vset.pattern.permute.xlu0 7
    %608 = vperm.xlu0 %607, %v544
    %v609 = vpop.permute.xlu0 %608
    %v611 = vmul.f32 %v605, %v27
    %v612 = vmul.f32 %v609, %v28
    %v613 = vadd.f32 %v601, %v611
    %v614 = vadd.f32 %v602, %v612
    %615 = vset.pattern.permute.xlu0 8
    %616 = vperm.xlu0 %615, %v543
    %v617 = vpop.permute.xlu0 %616
    %619 = vset.pattern.permute.xlu0 8
    %620 = vperm.xlu0 %619, %v544
    %v621 = vpop.permute.xlu0 %620
    %v623 = vmul.f32 %v617, %v30
    %v624 = vmul.f32 %v621, %v31
    %v625 = vadd.f32 %v613, %v623
    %v626 = vadd.f32 %v614, %v624
    %v627 = vadd.f32 %v590, %v625
    %v628 = vadd.f32 %v591, %v626
    %v629 = vtanh.pop %v627
    %v630 = vtanh.pop %v628
    %v631 = vmul.f32 %v629, 0.5
    %v632 = vmul.f32 %v630, 0.5
    %v633 = vadd.f32 %v631, 0.5
    %v634 = vadd.f32 %v632, 0.5
    %v635 = vmul.f32 %v633, %v545
    %v636 = vmul.f32 %v634, %v546
    %639 = vrot.lane.b32.xlu0 %v629, 119
    %v640 = vpop.permute.xlu0 %639
    %641 = vrot.lane.b32.xlu0 %v630, 119
    %v642 = vpop.permute.xlu0 %641
    %v645 = vmul.f32 %v633, %v640
    %v646 = vmul.f32 %v634, %v642
    %649 = vrot.lane.b32.xlu0 %v645, 3
    %v650 = vpop.permute.xlu0 %649
    %651 = vrot.lane.b32.xlu0 %v646, 3
    %v652 = vpop.permute.xlu0 %651
    %v655 = vadd.f32 %v635, %v650
    %v656 = vadd.f32 %v636, %v652
    %v657 = vtanh.pop %v655
    %v658 = vtanh.pop %v656
    %661 = vrot.lane.b32.xlu0 %v657, 3
    %v662 = vpop.permute.xlu0 %661
    %663 = vrot.lane.b32.xlu0 %v658, 3
    %v664 = vpop.permute.xlu0 %663
    %v667 = vmul.f32 %v633, %v662
    %v668 = vmul.f32 %v634, %v664
    %s669 = scalar_lea.vmem %s0, 10
    %v670 = vld [vmem:[%s669] sm:$0x3]
    %v672 = vrot.slane %v667, 6
    %673 = vrot.lane.b32.xlu0 %v672, 122
    %v674 = vpop.permute.xlu0 %673
    %v676 = vsel %vm39, %v670, %v674
    %678 = vset.pattern.permute.xlu0 0
    %679 = vperm.xlu0 %678, %v676
    %v680 = vpop.permute.xlu0 %679
    %682 = vset.pattern.permute.xlu0 0
    %683 = vperm.xlu0 %682, %v674
    %v684 = vpop.permute.xlu0 %683
    %v686 = vmul.f32 %v680, %v15
    %v687 = vmul.f32 %v684, %v16
    %v688 = vadd.f32 %v33, %v686
    %v689 = vadd.f32 %v34, %v687
    %690 = vset.pattern.permute.xlu0 1
    %691 = vperm.xlu0 %690, %v676
    %v692 = vpop.permute.xlu0 %691
    %694 = vset.pattern.permute.xlu0 1
    %695 = vperm.xlu0 %694, %v674
    %v696 = vpop.permute.xlu0 %695
    %v698 = vmul.f32 %v692, %v18
    %v699 = vmul.f32 %v696, %v19
    %v700 = vadd.f32 %v688, %v698
    %v701 = vadd.f32 %v689, %v699
    %702 = vset.pattern.permute.xlu0 2
    %703 = vperm.xlu0 %702, %v676
    %v704 = vpop.permute.xlu0 %703
    %706 = vset.pattern.permute.xlu0 2
    %707 = vperm.xlu0 %706, %v674
    %v708 = vpop.permute.xlu0 %707
    %v710 = vmul.f32 %v704, %v21
    %v711 = vmul.f32 %v708, %v22
    %v712 = vadd.f32 %v700, %v710
    %v713 = vadd.f32 %v701, %v711
    %714 = vset.pattern.permute.xlu0 6
    %715 = vperm.xlu0 %714, %v667
    %v716 = vpop.permute.xlu0 %715
    %719 = vset.pattern.permute.xlu0 6
    %720 = vperm.xlu0 %719, %v668
    %v721 = vpop.permute.xlu0 %720
    %v723 = vmul.f32 %v716, %v24
    %v724 = vmul.f32 %v721, %v25
    %725 = vset.pattern.permute.xlu0 7
    %726 = vperm.xlu0 %725, %v667
    %v727 = vpop.permute.xlu0 %726
    %729 = vset.pattern.permute.xlu0 7
    %730 = vperm.xlu0 %729, %v668
    %v731 = vpop.permute.xlu0 %730
    %v733 = vmul.f32 %v727, %v27
    %v734 = vmul.f32 %v731, %v28
    %v735 = vadd.f32 %v723, %v733
    %v736 = vadd.f32 %v724, %v734
    %737 = vset.pattern.permute.xlu0 8
    %738 = vperm.xlu0 %737, %v667
    %v739 = vpop.permute.xlu0 %738
    %741 = vset.pattern.permute.xlu0 8
    %742 = vperm.xlu0 %741, %v668
    %v743 = vpop.permute.xlu0 %742
    %v745 = vmul.f32 %v739, %v30
    %v746 = vmul.f32 %v743, %v31
    %v747 = vadd.f32 %v735, %v745
    %v748 = vadd.f32 %v736, %v746
    %v749 = vadd.f32 %v712, %v747
    %v750 = vadd.f32 %v713, %v748
    %v751 = vtanh.pop %v749
    %v752 = vtanh.pop %v750
    %v753 = vmul.f32 %v751, 0.5
    %v754 = vmul.f32 %v752, 0.5
    %v755 = vadd.f32 %v753, 0.5
    %v756 = vadd.f32 %v754, 0.5
    %v757 = vmul.f32 %v755, %v655
    %v758 = vmul.f32 %v756, %v656
    %761 = vrot.lane.b32.xlu0 %v751, 119
    %v762 = vpop.permute.xlu0 %761
    %763 = vrot.lane.b32.xlu0 %v752, 119
    %v764 = vpop.permute.xlu0 %763
    %v767 = vmul.f32 %v755, %v762
    %v768 = vmul.f32 %v756, %v764
    %771 = vrot.lane.b32.xlu0 %v767, 3
    %v772 = vpop.permute.xlu0 %771
    %773 = vrot.lane.b32.xlu0 %v768, 3
    %v774 = vpop.permute.xlu0 %773
    %v777 = vadd.f32 %v757, %v772
    %v778 = vadd.f32 %v758, %v774
    %v779 = vtanh.pop %v777
    %v780 = vtanh.pop %v778
    %783 = vrot.lane.b32.xlu0 %v779, 3
    %v784 = vpop.permute.xlu0 %783
    %785 = vrot.lane.b32.xlu0 %v780, 3
    %v786 = vpop.permute.xlu0 %785
    %v789 = vmul.f32 %v755, %v784
    %v790 = vmul.f32 %v756, %v786
    %s791 = scalar_lea.vmem %s0, 12
    %v792 = vld [vmem:[%s791] sm:$0x3]
    %v794 = vrot.slane %v789, 6
    %795 = vrot.lane.b32.xlu0 %v794, 122
    %v796 = vpop.permute.xlu0 %795
    %v798 = vsel %vm39, %v792, %v796
    %800 = vset.pattern.permute.xlu0 0
    %801 = vperm.xlu0 %800, %v798
    %v802 = vpop.permute.xlu0 %801
    %804 = vset.pattern.permute.xlu0 0
    %805 = vperm.xlu0 %804, %v796
    %v806 = vpop.permute.xlu0 %805
    %v808 = vmul.f32 %v802, %v15
    %v809 = vmul.f32 %v806, %v16
    %v810 = vadd.f32 %v33, %v808
    %v811 = vadd.f32 %v34, %v809
    %812 = vset.pattern.permute.xlu0 1
    %813 = vperm.xlu0 %812, %v798
    %v814 = vpop.permute.xlu0 %813
    %816 = vset.pattern.permute.xlu0 1
    %817 = vperm.xlu0 %816, %v796
    %v818 = vpop.permute.xlu0 %817
    %v820 = vmul.f32 %v814, %v18
    %v821 = vmul.f32 %v818, %v19
    %v822 = vadd.f32 %v810, %v820
    %v823 = vadd.f32 %v811, %v821
    %824 = vset.pattern.permute.xlu0 2
    %825 = vperm.xlu0 %824, %v798
    %v826 = vpop.permute.xlu0 %825
    %828 = vset.pattern.permute.xlu0 2
    %829 = vperm.xlu0 %828, %v796
    %v830 = vpop.permute.xlu0 %829
    %v832 = vmul.f32 %v826, %v21
    %v833 = vmul.f32 %v830, %v22
    %v834 = vadd.f32 %v822, %v832
    %v835 = vadd.f32 %v823, %v833
    %836 = vset.pattern.permute.xlu0 6
    %837 = vperm.xlu0 %836, %v789
    %v838 = vpop.permute.xlu0 %837
    %841 = vset.pattern.permute.xlu0 6
    %842 = vperm.xlu0 %841, %v790
    %v843 = vpop.permute.xlu0 %842
    %v845 = vmul.f32 %v838, %v24
    %v846 = vmul.f32 %v843, %v25
    %847 = vset.pattern.permute.xlu0 7
    %848 = vperm.xlu0 %847, %v789
    %v849 = vpop.permute.xlu0 %848
    %851 = vset.pattern.permute.xlu0 7
    %852 = vperm.xlu0 %851, %v790
    %v853 = vpop.permute.xlu0 %852
    %v855 = vmul.f32 %v849, %v27
    %v856 = vmul.f32 %v853, %v28
    %v857 = vadd.f32 %v845, %v855
    %v858 = vadd.f32 %v846, %v856
    %859 = vset.pattern.permute.xlu0 8
    %860 = vperm.xlu0 %859, %v789
    %v861 = vpop.permute.xlu0 %860
    %863 = vset.pattern.permute.xlu0 8
    %864 = vperm.xlu0 %863, %v790
    %v865 = vpop.permute.xlu0 %864
    %v867 = vmul.f32 %v861, %v30
    %v868 = vmul.f32 %v865, %v31
    %v869 = vadd.f32 %v857, %v867
    %v870 = vadd.f32 %v858, %v868
    %v871 = vadd.f32 %v834, %v869
    %v872 = vadd.f32 %v835, %v870
    %v873 = vtanh.pop %v871
    %v874 = vtanh.pop %v872
    %v875 = vmul.f32 %v873, 0.5
    %v876 = vmul.f32 %v874, 0.5
    %v877 = vadd.f32 %v875, 0.5
    %v878 = vadd.f32 %v876, 0.5
    %v879 = vmul.f32 %v877, %v777
    %v880 = vmul.f32 %v878, %v778
    %883 = vrot.lane.b32.xlu0 %v873, 119
    %v884 = vpop.permute.xlu0 %883
    %885 = vrot.lane.b32.xlu0 %v874, 119
    %v886 = vpop.permute.xlu0 %885
    %v889 = vmul.f32 %v877, %v884
    %v890 = vmul.f32 %v878, %v886
    %893 = vrot.lane.b32.xlu0 %v889, 3
    %v894 = vpop.permute.xlu0 %893
    %895 = vrot.lane.b32.xlu0 %v890, 3
    %v896 = vpop.permute.xlu0 %895
    %v899 = vadd.f32 %v879, %v894
    %v900 = vadd.f32 %v880, %v896
    %v901 = vtanh.pop %v899
    %v902 = vtanh.pop %v900
    %905 = vrot.lane.b32.xlu0 %v901, 3
    %v906 = vpop.permute.xlu0 %905
    %907 = vrot.lane.b32.xlu0 %v902, 3
    %v908 = vpop.permute.xlu0 %907
    %v911 = vmul.f32 %v877, %v906
    %v912 = vmul.f32 %v878, %v908
    %s913 = scalar_lea.vmem %s0, 14
    %v914 = vld [vmem:[%s913] sm:$0x3]
    %v916 = vrot.slane %v911, 6
    %917 = vrot.lane.b32.xlu0 %v916, 122
    %v918 = vpop.permute.xlu0 %917
    %v920 = vsel %vm39, %v914, %v918
    %922 = vset.pattern.permute.xlu0 0
    %923 = vperm.xlu0 %922, %v920
    %v924 = vpop.permute.xlu0 %923
    %926 = vset.pattern.permute.xlu0 0
    %927 = vperm.xlu0 %926, %v918
    %v928 = vpop.permute.xlu0 %927
    %v930 = vmul.f32 %v924, %v15
    %v931 = vmul.f32 %v928, %v16
    %v932 = vadd.f32 %v33, %v930
    %v933 = vadd.f32 %v34, %v931
    %934 = vset.pattern.permute.xlu0 1
    %935 = vperm.xlu0 %934, %v920
    %v936 = vpop.permute.xlu0 %935
    %938 = vset.pattern.permute.xlu0 1
    %939 = vperm.xlu0 %938, %v918
    %v940 = vpop.permute.xlu0 %939
    %v942 = vmul.f32 %v936, %v18
    %v943 = vmul.f32 %v940, %v19
    %v944 = vadd.f32 %v932, %v942
    %v945 = vadd.f32 %v933, %v943
    %946 = vset.pattern.permute.xlu0 2
    %947 = vperm.xlu0 %946, %v920
    %v948 = vpop.permute.xlu0 %947
    %950 = vset.pattern.permute.xlu0 2
    %951 = vperm.xlu0 %950, %v918
    %v952 = vpop.permute.xlu0 %951
    %v954 = vmul.f32 %v948, %v21
    %v955 = vmul.f32 %v952, %v22
    %v956 = vadd.f32 %v944, %v954
    %v957 = vadd.f32 %v945, %v955
    %958 = vset.pattern.permute.xlu0 6
    %959 = vperm.xlu0 %958, %v911
    %v960 = vpop.permute.xlu0 %959
    %963 = vset.pattern.permute.xlu0 6
    %964 = vperm.xlu0 %963, %v912
    %v965 = vpop.permute.xlu0 %964
    %v967 = vmul.f32 %v960, %v24
    %v968 = vmul.f32 %v965, %v25
    %969 = vset.pattern.permute.xlu0 7
    %970 = vperm.xlu0 %969, %v911
    %v971 = vpop.permute.xlu0 %970
    %973 = vset.pattern.permute.xlu0 7
    %974 = vperm.xlu0 %973, %v912
    %v975 = vpop.permute.xlu0 %974
    %v977 = vmul.f32 %v971, %v27
    %v978 = vmul.f32 %v975, %v28
    %v979 = vadd.f32 %v967, %v977
    %v980 = vadd.f32 %v968, %v978
    %981 = vset.pattern.permute.xlu0 8
    %982 = vperm.xlu0 %981, %v911
    %v983 = vpop.permute.xlu0 %982
    %985 = vset.pattern.permute.xlu0 8
    %986 = vperm.xlu0 %985, %v912
    %v987 = vpop.permute.xlu0 %986
    %v989 = vmul.f32 %v983, %v30
    %v990 = vmul.f32 %v987, %v31
    %v991 = vadd.f32 %v979, %v989
    %v992 = vadd.f32 %v980, %v990
    %v993 = vadd.f32 %v956, %v991
    %v994 = vadd.f32 %v957, %v992
    %v995 = vtanh.pop %v993
    %v996 = vtanh.pop %v994
    %v997 = vmul.f32 %v995, 0.5
    %v998 = vmul.f32 %v996, 0.5
    %v999 = vadd.f32 %v997, 0.5
    %v1000 = vadd.f32 %v998, 0.5
    %v1001 = vmul.f32 %v999, %v899
    %v1002 = vmul.f32 %v1000, %v900
    %1005 = vrot.lane.b32.xlu0 %v995, 119
    %v1006 = vpop.permute.xlu0 %1005
    %1007 = vrot.lane.b32.xlu0 %v996, 119
    %v1008 = vpop.permute.xlu0 %1007
    %v1011 = vmul.f32 %v999, %v1006
    %v1012 = vmul.f32 %v1000, %v1008
    %1015 = vrot.lane.b32.xlu0 %v1011, 3
    %v1016 = vpop.permute.xlu0 %1015
    %1017 = vrot.lane.b32.xlu0 %v1012, 3
    %v1018 = vpop.permute.xlu0 %1017
    %v1021 = vadd.f32 %v1001, %v1016
    %v1022 = vadd.f32 %v1002, %v1018
    %v1023 = vtanh.pop %v1021
    %v1024 = vtanh.pop %v1022
    %1027 = vrot.lane.b32.xlu0 %v1023, 3
    %v1028 = vpop.permute.xlu0 %1027
    %1029 = vrot.lane.b32.xlu0 %v1024, 3
    %v1030 = vpop.permute.xlu0 %1029
    %v1033 = vmul.f32 %v999, %v1028
    %v1034 = vmul.f32 %v1000, %v1030
    %v1036 = vrot.slane %v1033, 6
    %1037 = vrot.lane.b32.xlu0 %v1036, 122
    %v1038 = vpop.permute.xlu0 %1037
    %v1040 = vsel %vm39, %v914, %v1038
    %1042 = vset.pattern.permute.xlu0 0
    %1043 = vperm.xlu0 %1042, %v1040
    %v1044 = vpop.permute.xlu0 %1043
    %1046 = vset.pattern.permute.xlu0 0
    %1047 = vperm.xlu0 %1046, %v1038
    %v1048 = vpop.permute.xlu0 %1047
    %v1050 = vmul.f32 %v1044, %v15
    %v1051 = vmul.f32 %v1048, %v16
    %v1052 = vadd.f32 %v33, %v1050
    %v1053 = vadd.f32 %v34, %v1051
    %1054 = vset.pattern.permute.xlu0 1
    %1055 = vperm.xlu0 %1054, %v1040
    %v1056 = vpop.permute.xlu0 %1055
    %1058 = vset.pattern.permute.xlu0 1
    %1059 = vperm.xlu0 %1058, %v1038
    %v1060 = vpop.permute.xlu0 %1059
    %v1062 = vmul.f32 %v1056, %v18
    %v1063 = vmul.f32 %v1060, %v19
    %v1064 = vadd.f32 %v1052, %v1062
    %v1065 = vadd.f32 %v1053, %v1063
    %1066 = vset.pattern.permute.xlu0 2
    %1067 = vperm.xlu0 %1066, %v1040
    %v1068 = vpop.permute.xlu0 %1067
    %1070 = vset.pattern.permute.xlu0 2
    %1071 = vperm.xlu0 %1070, %v1038
    %v1072 = vpop.permute.xlu0 %1071
    %v1074 = vmul.f32 %v1068, %v21
    %v1075 = vmul.f32 %v1072, %v22
    %v1076 = vadd.f32 %v1064, %v1074
    %v1077 = vadd.f32 %v1065, %v1075
    %1078 = vset.pattern.permute.xlu0 6
    %1079 = vperm.xlu0 %1078, %v1033
    %v1080 = vpop.permute.xlu0 %1079
    %1083 = vset.pattern.permute.xlu0 6
    %1084 = vperm.xlu0 %1083, %v1034
    %v1085 = vpop.permute.xlu0 %1084
    %v1087 = vmul.f32 %v1080, %v24
    %v1088 = vmul.f32 %v1085, %v25
    %1089 = vset.pattern.permute.xlu0 7
    %1090 = vperm.xlu0 %1089, %v1033
    %v1091 = vpop.permute.xlu0 %1090
    %1093 = vset.pattern.permute.xlu0 7
    %1094 = vperm.xlu0 %1093, %v1034
    %v1095 = vpop.permute.xlu0 %1094
    %v1097 = vmul.f32 %v1091, %v27
    %v1098 = vmul.f32 %v1095, %v28
    %v1099 = vadd.f32 %v1087, %v1097
    %v1100 = vadd.f32 %v1088, %v1098
    %1101 = vset.pattern.permute.xlu0 8
    %1102 = vperm.xlu0 %1101, %v1033
    %v1103 = vpop.permute.xlu0 %1102
    %1105 = vset.pattern.permute.xlu0 8
    %1106 = vperm.xlu0 %1105, %v1034
    %v1107 = vpop.permute.xlu0 %1106
    %v1109 = vmul.f32 %v1103, %v30
    %v1110 = vmul.f32 %v1107, %v31
    %v1111 = vadd.f32 %v1099, %v1109
    %v1112 = vadd.f32 %v1100, %v1110
    %v1113 = vadd.f32 %v1076, %v1111
    %v1114 = vadd.f32 %v1077, %v1112
    %v1115 = vtanh.pop %v1113
    %v1116 = vtanh.pop %v1114
    %v1117 = vmul.f32 %v1115, 0.5
    %v1118 = vmul.f32 %v1116, 0.5
    %v1119 = vadd.f32 %v1117, 0.5
    %v1120 = vadd.f32 %v1118, 0.5
    %v1121 = vmul.f32 %v1119, %v1021
    %v1122 = vmul.f32 %v1120, %v1022
    %1125 = vrot.lane.b32.xlu0 %v1115, 119
    %v1126 = vpop.permute.xlu0 %1125
    %1127 = vrot.lane.b32.xlu0 %v1116, 119
    %v1128 = vpop.permute.xlu0 %1127
    %v1131 = vmul.f32 %v1119, %v1126
    %v1132 = vmul.f32 %v1120, %v1128
    %1135 = vrot.lane.b32.xlu0 %v1131, 3
    %v1136 = vpop.permute.xlu0 %1135
    %1137 = vrot.lane.b32.xlu0 %v1132, 3
    %v1138 = vpop.permute.xlu0 %1137
    %v1141 = vadd.f32 %v1121, %v1136
    %v1142 = vadd.f32 %v1122, %v1138
    %v1143 = vtanh.pop %v1141
    %v1144 = vtanh.pop %v1142
    %1147 = vrot.lane.b32.xlu0 %v1143, 3
    %v1148 = vpop.permute.xlu0 %1147
    %1149 = vrot.lane.b32.xlu0 %v1144, 3
    %v1150 = vpop.permute.xlu0 %1149
    %v1153 = vmul.f32 %v1119, %v1148
    %v1154 = vmul.f32 %v1120, %v1150
    %vm1155 = vcmp.ge.s32.totalorder %v36, 2
    %vm1156 = vcmp.ge.s32.totalorder %v37, 2
    %vm1157 = vcmp.lt.s32.totalorder %v36, 10
    %vm1158 = vcmp.lt.s32.totalorder %v37, 10
    %vm1159 = vmand %vm1155, %vm1157
    %vm1160 = vmand %vm1156, %vm1158
    %v1161 = vsel %vm1159, 1, 0
    %v1162 = vsel %vm1160, 1, 0
    %vm1163 = vcmp.eq.s32.totalorder %v1161, 1
    %vm1164 = vcmp.eq.s32.totalorder %v1162, 1
    %v1165 = vsel %vm1163, %v1153, %v1033
    %v1166 = vsel %vm1164, %v1154, %v1034
    %v1167 = vsel %vm1163, %v1141, %v1021
    %v1168 = vsel %vm1164, %v1142, %v1022
    %v1170 = vrot.slane %v1165, 6
    %1171 = vrot.lane.b32.xlu0 %v1170, 122
    %v1172 = vpop.permute.xlu0 %1171
    %v1174 = vsel %vm39, %v914, %v1172
    %1176 = vset.pattern.permute.xlu0 0
    %1177 = vperm.xlu0 %1176, %v1174
    %v1178 = vpop.permute.xlu0 %1177
    %1180 = vset.pattern.permute.xlu0 0
    %1181 = vperm.xlu0 %1180, %v1172
    %v1182 = vpop.permute.xlu0 %1181
    %v1184 = vmul.f32 %v1178, %v15
    %v1185 = vmul.f32 %v1182, %v16
    %v1186 = vadd.f32 %v33, %v1184
    %v1187 = vadd.f32 %v34, %v1185
    %1188 = vset.pattern.permute.xlu0 1
    %1189 = vperm.xlu0 %1188, %v1174
    %v1190 = vpop.permute.xlu0 %1189
    %1192 = vset.pattern.permute.xlu0 1
    %1193 = vperm.xlu0 %1192, %v1172
    %v1194 = vpop.permute.xlu0 %1193
    %v1196 = vmul.f32 %v1190, %v18
    %v1197 = vmul.f32 %v1194, %v19
    %v1198 = vadd.f32 %v1186, %v1196
    %v1199 = vadd.f32 %v1187, %v1197
    %1200 = vset.pattern.permute.xlu0 2
    %1201 = vperm.xlu0 %1200, %v1174
    %v1202 = vpop.permute.xlu0 %1201
    %1204 = vset.pattern.permute.xlu0 2
    %1205 = vperm.xlu0 %1204, %v1172
    %v1206 = vpop.permute.xlu0 %1205
    %v1208 = vmul.f32 %v1202, %v21
    %v1209 = vmul.f32 %v1206, %v22
    %v1210 = vadd.f32 %v1198, %v1208
    %v1211 = vadd.f32 %v1199, %v1209
    %1212 = vset.pattern.permute.xlu0 6
    %1213 = vperm.xlu0 %1212, %v1165
    %v1214 = vpop.permute.xlu0 %1213
    %1217 = vset.pattern.permute.xlu0 6
    %1218 = vperm.xlu0 %1217, %v1166
    %v1219 = vpop.permute.xlu0 %1218
    %v1221 = vmul.f32 %v1214, %v24
    %v1222 = vmul.f32 %v1219, %v25
    %1223 = vset.pattern.permute.xlu0 7
    %1224 = vperm.xlu0 %1223, %v1165
    %v1225 = vpop.permute.xlu0 %1224
    %1227 = vset.pattern.permute.xlu0 7
    %1228 = vperm.xlu0 %1227, %v1166
    %v1229 = vpop.permute.xlu0 %1228
    %v1231 = vmul.f32 %v1225, %v27
    %v1232 = vmul.f32 %v1229, %v28
    %v1233 = vadd.f32 %v1221, %v1231
    %v1234 = vadd.f32 %v1222, %v1232
    %1235 = vset.pattern.permute.xlu0 8
    %1236 = vperm.xlu0 %1235, %v1165
    %v1237 = vpop.permute.xlu0 %1236
    %1239 = vset.pattern.permute.xlu0 8
    %1240 = vperm.xlu0 %1239, %v1166
    %v1241 = vpop.permute.xlu0 %1240
    %v1243 = vmul.f32 %v1237, %v30
    %v1244 = vmul.f32 %v1241, %v31
    %v1245 = vadd.f32 %v1233, %v1243
    %v1246 = vadd.f32 %v1234, %v1244
    %v1247 = vadd.f32 %v1210, %v1245
    %v1248 = vadd.f32 %v1211, %v1246
    %v1249 = vtanh.pop %v1247
    %v1250 = vtanh.pop %v1248
    %v1251 = vmul.f32 %v1249, 0.5
    %v1252 = vmul.f32 %v1250, 0.5
    %v1253 = vadd.f32 %v1251, 0.5
    %v1254 = vadd.f32 %v1252, 0.5
    %v1255 = vmul.f32 %v1253, %v1167
    %v1256 = vmul.f32 %v1254, %v1168
    %1259 = vrot.lane.b32.xlu0 %v1249, 119
    %v1260 = vpop.permute.xlu0 %1259
    %1261 = vrot.lane.b32.xlu0 %v1250, 119
    %v1262 = vpop.permute.xlu0 %1261
    %v1265 = vmul.f32 %v1253, %v1260
    %v1266 = vmul.f32 %v1254, %v1262
    %1269 = vrot.lane.b32.xlu0 %v1265, 3
    %v1270 = vpop.permute.xlu0 %1269
    %1271 = vrot.lane.b32.xlu0 %v1266, 3
    %v1272 = vpop.permute.xlu0 %1271
    %v1275 = vadd.f32 %v1255, %v1270
    %v1276 = vadd.f32 %v1256, %v1272
    %v1277 = vtanh.pop %v1275
    %v1278 = vtanh.pop %v1276
    %1281 = vrot.lane.b32.xlu0 %v1277, 3
    %v1282 = vpop.permute.xlu0 %1281
    %1283 = vrot.lane.b32.xlu0 %v1278, 3
    %v1284 = vpop.permute.xlu0 %1283
    %v1287 = vmul.f32 %v1253, %v1282
    %v1288 = vmul.f32 %v1254, %v1284
    %vm1289 = vcmp.ge.s32.totalorder %v36, 4
    %vm1290 = vcmp.ge.s32.totalorder %v37, 4
    %vm1291 = vmand %vm1289, %vm1157
    %vm1292 = vmand %vm1290, %vm1158
    %v1293 = vsel %vm1291, 1, 0
    %v1294 = vsel %vm1292, 1, 0
    %vm1295 = vcmp.eq.s32.totalorder %v1293, 1
    %vm1296 = vcmp.eq.s32.totalorder %v1294, 1
    %v1297 = vsel %vm1295, %v1287, %v1165
    %v1298 = vsel %vm1296, %v1288, %v1166
    %v1299 = vsel %vm1295, %v1275, %v1167
    %v1300 = vsel %vm1296, %v1276, %v1168
    %v1302 = vrot.slane %v1297, 6
    %1303 = vrot.lane.b32.xlu0 %v1302, 122
    %v1304 = vpop.permute.xlu0 %1303
    %v1306 = vsel %vm39, %v914, %v1304
    %1308 = vset.pattern.permute.xlu0 0
    %1309 = vperm.xlu0 %1308, %v1306
    %v1310 = vpop.permute.xlu0 %1309
    %1312 = vset.pattern.permute.xlu0 0
    %1313 = vperm.xlu0 %1312, %v1304
    %v1314 = vpop.permute.xlu0 %1313
    %v1316 = vmul.f32 %v1310, %v15
    %v1317 = vmul.f32 %v1314, %v16
    %v1318 = vadd.f32 %v33, %v1316
    %v1319 = vadd.f32 %v34, %v1317
    %1320 = vset.pattern.permute.xlu0 1
    %1321 = vperm.xlu0 %1320, %v1306
    %v1322 = vpop.permute.xlu0 %1321
    %1324 = vset.pattern.permute.xlu0 1
    %1325 = vperm.xlu0 %1324, %v1304
    %v1326 = vpop.permute.xlu0 %1325
    %v1328 = vmul.f32 %v1322, %v18
    %v1329 = vmul.f32 %v1326, %v19
    %v1330 = vadd.f32 %v1318, %v1328
    %v1331 = vadd.f32 %v1319, %v1329
    %1332 = vset.pattern.permute.xlu0 2
    %1333 = vperm.xlu0 %1332, %v1306
    %v1334 = vpop.permute.xlu0 %1333
    %1336 = vset.pattern.permute.xlu0 2
    %1337 = vperm.xlu0 %1336, %v1304
    %v1338 = vpop.permute.xlu0 %1337
    %v1340 = vmul.f32 %v1334, %v21
    %v1341 = vmul.f32 %v1338, %v22
    %v1342 = vadd.f32 %v1330, %v1340
    %v1343 = vadd.f32 %v1331, %v1341
    %1344 = vset.pattern.permute.xlu0 6
    %1345 = vperm.xlu0 %1344, %v1297
    %v1346 = vpop.permute.xlu0 %1345
    %1349 = vset.pattern.permute.xlu0 6
    %1350 = vperm.xlu0 %1349, %v1298
    %v1351 = vpop.permute.xlu0 %1350
    %v1353 = vmul.f32 %v1346, %v24
    %v1354 = vmul.f32 %v1351, %v25
    %1355 = vset.pattern.permute.xlu0 7
    %1356 = vperm.xlu0 %1355, %v1297
    %v1357 = vpop.permute.xlu0 %1356
    %1359 = vset.pattern.permute.xlu0 7
    %1360 = vperm.xlu0 %1359, %v1298
    %v1361 = vpop.permute.xlu0 %1360
    %v1363 = vmul.f32 %v1357, %v27
    %v1364 = vmul.f32 %v1361, %v28
    %v1365 = vadd.f32 %v1353, %v1363
    %v1366 = vadd.f32 %v1354, %v1364
    %1367 = vset.pattern.permute.xlu0 8
    %1368 = vperm.xlu0 %1367, %v1297
    %v1369 = vpop.permute.xlu0 %1368
    %1371 = vset.pattern.permute.xlu0 8
    %1372 = vperm.xlu0 %1371, %v1298
    %v1373 = vpop.permute.xlu0 %1372
    %v1375 = vmul.f32 %v1369, %v30
    %v1376 = vmul.f32 %v1373, %v31
    %v1377 = vadd.f32 %v1365, %v1375
    %v1378 = vadd.f32 %v1366, %v1376
    %v1379 = vadd.f32 %v1342, %v1377
    %v1380 = vadd.f32 %v1343, %v1378
    %v1381 = vtanh.pop %v1379
    %v1382 = vtanh.pop %v1380
    %v1383 = vmul.f32 %v1381, 0.5
    %v1384 = vmul.f32 %v1382, 0.5
    %v1385 = vadd.f32 %v1383, 0.5
    %v1386 = vadd.f32 %v1384, 0.5
    %v1387 = vmul.f32 %v1385, %v1299
    %v1388 = vmul.f32 %v1386, %v1300
    %1391 = vrot.lane.b32.xlu0 %v1381, 119
    %v1392 = vpop.permute.xlu0 %1391
    %1393 = vrot.lane.b32.xlu0 %v1382, 119
    %v1394 = vpop.permute.xlu0 %1393
    %v1397 = vmul.f32 %v1385, %v1392
    %v1398 = vmul.f32 %v1386, %v1394
    %1401 = vrot.lane.b32.xlu0 %v1397, 3
    %v1402 = vpop.permute.xlu0 %1401
    %1403 = vrot.lane.b32.xlu0 %v1398, 3
    %v1404 = vpop.permute.xlu0 %1403
    %v1407 = vadd.f32 %v1387, %v1402
    %v1408 = vadd.f32 %v1388, %v1404
    %v1409 = vtanh.pop %v1407
    %v1410 = vtanh.pop %v1408
    %1413 = vrot.lane.b32.xlu0 %v1409, 3
    %v1414 = vpop.permute.xlu0 %1413
    %1415 = vrot.lane.b32.xlu0 %v1410, 3
    %v1416 = vpop.permute.xlu0 %1415
    %v1419 = vmul.f32 %v1385, %v1414
    %v1420 = vmul.f32 %v1386, %v1416
    %vm1421 = vcmp.ge.s32.totalorder %v36, 6
    %vm1422 = vcmp.ge.s32.totalorder %v37, 6
    %vm1423 = vmand %vm1421, %vm1157
    %vm1424 = vmand %vm1422, %vm1158
    %v1425 = vsel %vm1423, 1, 0
    %v1426 = vsel %vm1424, 1, 0
    %vm1427 = vcmp.eq.s32.totalorder %v1425, 1
    %vm1428 = vcmp.eq.s32.totalorder %v1426, 1
    %v1429 = vsel %vm1427, %v1419, %v1297
    %v1430 = vsel %vm1428, %v1420, %v1298
    %v1431 = vsel %vm1428, %v1408, %v1300
    %v1433 = vrot.slane %v1429, 6
    %1434 = vrot.lane.b32.xlu0 %v1433, 122
    %v1435 = vpop.permute.xlu0 %1434
    %1436 = vset.pattern.permute.xlu0 0
    %1437 = vperm.xlu0 %1436, %v1435
    %v1438 = vpop.permute.xlu0 %1437
    %v1440 = vmul.f32 %v1438, %v16
    %v1441 = vadd.f32 %v34, %v1440
    %1442 = vset.pattern.permute.xlu0 1
    %1443 = vperm.xlu0 %1442, %v1435
    %v1444 = vpop.permute.xlu0 %1443
    %v1446 = vmul.f32 %v1444, %v19
    %v1447 = vadd.f32 %v1441, %v1446
    %1448 = vset.pattern.permute.xlu0 2
    %1449 = vperm.xlu0 %1448, %v1435
    %v1450 = vpop.permute.xlu0 %1449
    %v1452 = vmul.f32 %v1450, %v22
    %v1453 = vadd.f32 %v1447, %v1452
    %1455 = vset.pattern.permute.xlu0 6
    %1456 = vperm.xlu0 %1455, %v1430
    %v1457 = vpop.permute.xlu0 %1456
    %v1459 = vmul.f32 %v1457, %v25
    %1460 = vset.pattern.permute.xlu0 7
    %1461 = vperm.xlu0 %1460, %v1430
    %v1462 = vpop.permute.xlu0 %1461
    %v1464 = vmul.f32 %v1462, %v28
    %v1465 = vadd.f32 %v1459, %v1464
    %1466 = vset.pattern.permute.xlu0 8
    %1467 = vperm.xlu0 %1466, %v1430
    %v1468 = vpop.permute.xlu0 %1467
    %v1470 = vmul.f32 %v1468, %v31
    %v1471 = vadd.f32 %v1465, %v1470
    %v1472 = vadd.f32 %v1453, %v1471
    %v1473 = vtanh.pop %v1472
    %v1474 = vmul.f32 %v1473, 0.5
    %v1475 = vadd.f32 %v1474, 0.5
    %v1476 = vmul.f32 %v1475, %v1431
    %1478 = vrot.lane.b32.xlu0 %v1473, 119
    %v1479 = vpop.permute.xlu0 %1478
    %v1481 = vmul.f32 %v1475, %v1479
    %1483 = vrot.lane.b32.xlu0 %v1481, 3
    %v1484 = vpop.permute.xlu0 %1483
    %v1486 = vadd.f32 %v1476, %v1484
    %v1487 = vtanh.pop %v1486
    %1489 = vrot.lane.b32.xlu0 %v1487, 3
    %v1490 = vpop.permute.xlu0 %1489
    %v1492 = vmul.f32 %v1475, %v1490
    %vm1493 = vcmp.ge.s32.totalorder %v37, 8
    %vm1494 = vmand %vm1493, %vm1158
    %v1495 = vsel %vm1494, 1, 0
    %vm1496 = vcmp.eq.s32.totalorder %v1495, 1
    %v1497 = vsel %vm1496, %v1492, %v1430
    %v1498 = vld [vmem:[%s2 + $0x3] sm:$0x1]
    %v1499 = vld [vmem:[%s2] sm:$0x1]
    %1501 = vset.pattern.permute.xlu0 6
    %1502 = vperm.xlu0 %1501, %v1497
    %v1503 = vpop.permute.xlu0 %1502
    %v1505 = vlaneseq
    %v1506 = vshrl.u32 %v1505, 7
    %v1507 = vsub.s32 0, %v1506
    %v1508 = vrot.slane %v1499, %v1507
    %v1509 = vmul.f32 %v1503, %v1508
    %v1510 = vlaneseq
    %v1511 = vshrl.u32 %v1510, 7
    %v1512 = vsub.s32 0, %v1511
    %v1513 = vrot.slane %v1498, %v1512
    %v1514 = vadd.f32 %v1513, %v1509
    %v1515 = vld [vmem:[%s2 + $0x1] sm:$0x1]
    %1516 = vset.pattern.permute.xlu0 7
    %1517 = vperm.xlu0 %1516, %v1497
    %v1518 = vpop.permute.xlu0 %1517
    %v1520 = vlaneseq
    %v1521 = vshrl.u32 %v1520, 7
    %v1522 = vsub.s32 0, %v1521
    %v1523 = vrot.slane %v1515, %v1522
    %v1524 = vmul.f32 %v1518, %v1523
    %v1525 = vadd.f32 %v1514, %v1524
    %v1526 = vld [vmem:[%s2 + $0x2] sm:$0x1]
    %1527 = vset.pattern.permute.xlu0 8
    %1528 = vperm.xlu0 %1527, %v1497
    %v1529 = vpop.permute.xlu0 %1528
    %v1531 = vlaneseq
    %v1532 = vshrl.u32 %v1531, 7
    %v1533 = vsub.s32 0, %v1532
    %v1534 = vrot.slane %v1526, %v1533
    %v1535 = vmul.f32 %v1529, %v1534
    %v1536 = vadd.f32 %v1525, %v1535
    %v1537 = vadd.f32 %v1536, 1.0
    %v1538 = vmul.f32 %v1537, %v914
    %v1539 = vmax.f32 %v1538, 0.0
    %vm1540 = vcmask 17408
    %1541 = vst.msk [vmem:[#allocation2] sm:$0x3] %vm1540, %v1539
    // Predicated region
    $region14: #{tpu_custom_call.1} parent=1 // pred_check
      _
    $region15: #{tpu_custom_call.1} parent=1 // pred_check_branch
      %1543 = sbr.rel (0) target = $region17
    $region16: #{tpu_custom_call.1} parent=1 // pred_region
      %s1545 = ssub.s32 32, 32
      %1546 = vsyncadd [#allocation3], %s1545
      %s1548 = sshll.u32 [#allocation2], 4
      %s1549 = int_to_ptr.vmem [resolvable:$true] %s1548
      %1551 = dma.vmem_to_hbm [thread:$0]  %s1549, 32, %s3, [#allocation3]
    $region17: #{tpu_custom_call.1} parent=1 // pred_fallthru
      _
    // Predicated region
    $region18: #{tpu_custom_call.1} parent=1 // pred_check
      _
    $region19: #{tpu_custom_call.1} parent=1 // pred_check_branch
      %1553 = sbr.rel (0) target = $region21
    $region20: #{tpu_custom_call.1} parent=1 // pred_region
      %1554 = dma.done [#allocation3], 32
    $region21: #{tpu_custom_call.1} parent=1 // pred_fallthru
      _
    %1555 = vsyncpa [#allocation3], 1

</llo_original>
